<compile_context>
chip_gen: v5e
topology: v5e:2x2
jax: 0.10.0
libtpu: 0.0.40
codegen_flags: <defaults>
</compile_context>

<pallas_src>
import jax
import jax.numpy as jnp
from jax.experimental import pallas as pl
from jax.experimental.pallas import tpu as pltpu


def _make_kernel(k, tmr, prec_scores, operand_dtype):
    eps_sq = 1e-24  # F.normalize eps=1e-12, squared

    def kernel(emb_ref, bounds_ref, b_ref, s_ref, r_ref, out_ref):
        # emb_ref:    (tmr, k*D)  k packed nodes per row (streamed)
        # bounds_ref: (2, k*G)    [lo; hi] node-id interval per (slot, graph) column
        # b_ref:      (k*D, k*G)  block-diagonal summary table (pre-scaled by d, scale)
        # s_ref:      (k*D, k)    0/1 per-slot group-sum matrix (for |x|^2)
        # r_ref:      (k*G, k)    0/1 per-slot group-sum matrix (over graphs)
        # out_ref:    (tmr, k)    affinity score per packed node (float32)
        x = emb_ref[...]
        xf = x.astype(jnp.float32)

        # |x|^2 per node: grouped lane reduction via 0/1 matmul (exact at HIGHEST).
        ss = jnp.dot(xf * xf, s_ref[...],
                     precision=jax.lax.Precision.HIGHEST,
                     preferred_element_type=jnp.float32)            # (tmr, k)

        # Scores of every packed node against every graph summary (MXU).
        scores = jnp.dot(x.astype(operand_dtype), b_ref[...],
                         precision=prec_scores,
                         preferred_element_type=jnp.float32)        # (tmr, k*G)

        # Select each node's own graph via ptr intervals (vectorized compare;
        # no per-node gather, no per-graph chained where).
        row = jax.lax.broadcasted_iota(jnp.int32, (tmr, 1), 0)
        base = (pl.program_id(0) * tmr + row) * k                   # node id of slot 0
        bnd = bounds_ref[...]
        mask = (base >= bnd[0:1, :]) & (base < bnd[1:2, :])         # (tmr, k*G)
        masked = jnp.where(mask, scores, 0.0)
        # NOTE: rows past N in a padded final tile have mask == False everywhere,
        # so their dot is exactly 0; their (garbage) norms feed nothing valid and
        # are never written back.  Do not add cross-row reductions here.
        dsel = jnp.dot(masked, r_ref[...],
                       precision=jax.lax.Precision.HIGHEST,
                       preferred_element_type=jnp.float32)          # (tmr, k)

        # F.normalize(p=2, eps=1e-12): x / max(||x||, eps) == x * rsqrt(max(|x|^2, eps^2))
        inv_norm = jax.lax.rsqrt(jnp.maximum(ss, eps_sq))
        out_ref[...] = (dsel * inv_norm).astype(out_ref.dtype)

    return kernel


def _choose_pack(n_nodes, d_hidden):
    """Nodes packed per VMEM row; targets ~256-lane rows, free reshape only."""
    if d_hidden >= 128 or 128 % d_hidden != 0:
        return 1
    base = 128 // d_hidden
    for m in (2, 1):
        k = base * m
        if n_nodes % k == 0:
            return k
    k = base
    while k > 1 and n_nodes % k:
        k //= 2
    return k


def _choose_block_rows(n_rows, row_lane_bytes, requested=None):
    """~2 MiB of lane-padded emb bytes per grid step; (8,128)-rule safe."""
    if requested is not None:
        tmr = int(requested)
    else:
        tmr = max(8, (2 << 20) // max(row_lane_bytes, 1))
        tmr = min(tmr, 8192)
    tmr = max(8, (tmr // 8) * 8)
    if tmr >= n_rows:
        return n_rows          # single block == full dim (allowed even if not %8)
    return tmr


def _padded_vmem_bytes(rows, cols, dtype):
    itemsize = jnp.dtype(dtype).itemsize
    sub = 8 * max(1, 4 // itemsize)          # sublane packing: f32->8, bf16->16
    r = -(-rows // sub) * sub
    c = -(-cols // 128) * 128
    return r * c * itemsize


def global_emb_d_forward(emb, summary, ptr, d, scale, *, block_rows=None):
    """emb: (N, D), summary: (G, D), ptr: (G+1,) int, d: (D,), scale: (1,).

    Returns the (N,) float32 affinity scores of global_emb_D.forward.
    """
    N, D = emb.shape
    G = summary.shape[0]
    assert ptr.shape[0] == G + 1

    # --- lane packing: k consecutive nodes per VMEM row (free contiguous reshape)
    k = _choose_pack(N, D)
    Dp = k * D
    Nr = N // k
    emb_p = emb.reshape(Nr, Dp)

    # --- fold diag(d) and scale into the tiny per-graph summary table
    w = (summary.astype(jnp.float32)
         * d.astype(jnp.float32)[None, :]
         * scale.astype(jnp.float32)[0])                             # (G, D)

    eyek = jnp.eye(k, dtype=jnp.float32)
    # B[j*D+dd, j2*G+g] = (j==j2) * w[g, dd]  -> block-diagonal summary table
    B = jnp.einsum('jk,dg->jdkg', eyek, w.T).reshape(Dp, k * G)
    S = jnp.repeat(eyek, D, axis=0)          # (k*D, k)  group-sum for |x|^2
    R = jnp.repeat(eyek, G, axis=0)          # (k*G, k)  group-sum over graphs

    # Per-column node-id interval: node (base + slot) in graph g  <=>  lo <= base < hi
    c = jnp.arange(k * G, dtype=jnp.int32)
    g_idx = c % G
    slot = c // G
    ptr_i = ptr.astype(jnp.int32)
    bounds = jnp.stack([ptr_i[g_idx] - slot, ptr_i[g_idx + 1] - slot]).astype(jnp.int32)

    # dtype / precision for the scores matmul
    if emb.dtype == jnp.bfloat16:
        operand_dtype = jnp.bfloat16
        prec_scores = jax.lax.Precision.DEFAULT
        B = B.astype(jnp.bfloat16)
    else:
        operand_dtype = jnp.float32
        prec_scores = jax.lax.Precision.HIGHEST

    itemsize = jnp.dtype(emb.dtype).itemsize
    row_lane_bytes = (-(-Dp // 128) * 128) * itemsize
    tmr = _choose_block_rows(Nr, row_lane_bytes, block_rows)
    num_tiles = pl.cdiv(Nr, tmr)

    # VMEM budget from actual padded, double-buffered block sizes (+ headroom
    # for the HIGHEST-precision operand decomposition scratch).
    needed = 2 * (
        _padded_vmem_bytes(tmr, Dp, emb.dtype)
        + _padded_vmem_bytes(2, k * G, jnp.int32)
        + _padded_vmem_bytes(Dp, k * G, B.dtype)
        + _padded_vmem_bytes(Dp, k, jnp.float32)
        + _padded_vmem_bytes(k * G, k, jnp.float32)
        + _padded_vmem_bytes(tmr, k, jnp.float32))
    vmem_limit = int(min(max(4 * needed + (4 << 20), 16 << 20), 48 << 20))

    kernel = _make_kernel(k=k, tmr=tmr, prec_scores=prec_scores,
                          operand_dtype=operand_dtype)

    out = pl.pallas_call(
        kernel,
        out_shape=jax.ShapeDtypeStruct((Nr, k), jnp.float32),
        grid=(num_tiles,),
        in_specs=[
            pl.BlockSpec((tmr, Dp), lambda i: (i, 0)),      # packed emb rows (streamed)
            pl.BlockSpec((2, k * G), lambda i: (0, 0)),     # ptr intervals   (resident)
            pl.BlockSpec((Dp, k * G), lambda i: (0, 0)),    # summary table   (resident)
            pl.BlockSpec((Dp, k), lambda i: (0, 0)),        # |x|^2 group-sum (resident)
            pl.BlockSpec((k * G, k), lambda i: (0, 0)),     # graph group-sum (resident)
        ],
        out_specs=pl.BlockSpec((tmr, k), lambda i: (i, 0)),
        compiler_params=pltpu.CompilerParams(
            dimension_semantics=("parallel",),
            vmem_limit_bytes=vmem_limit,
        ),
    )(emb_p, bounds, B, S, R)

    return out.reshape(N)


def _reference(emb, summary, ptr, d, scale):
    x = emb.astype(jnp.float32)
    norm = jnp.sqrt(jnp.sum(x * x, axis=-1, keepdims=True))
    xn = x / jnp.maximum(norm, 1e-12)
    sim = xn * d.astype(jnp.float32)[None, :]
    seg = jnp.searchsorted(ptr, jnp.arange(emb.shape[0]), side="right") - 1
    s = jnp.take(summary.astype(jnp.float32), seg, axis=0)
    return jnp.sum(sim * s, axis=-1) * scale.astype(jnp.float32)[0]


if __name__ == "__main__":
    key = jax.random.PRNGKey(0)
    k1, k2, k3 = jax.random.split(key, 3)

    n_hidden = 32                                          # D
    ptr = jnp.array([0, 50, 87, 160], dtype=jnp.int32)     # batch.ptr, 3 uneven graphs
    num_graphs = ptr.shape[0] - 1
    N = 160

    emb = jax.random.normal(k1, (N, n_hidden), dtype=jnp.float32)
    summary = jax.random.normal(k2, (num_graphs, n_hidden), dtype=jnp.float32)
    # Learnable params (ones / 1.0 at init in the module); non-trivial values here
    # so the d/scale folding is actually exercised.  Deterministic via PRNGKey(0).
    d = 1.0 + 0.1 * jax.random.normal(k3, (n_hidden,), dtype=jnp.float32)
    scale = jnp.full((1,), 1.25, dtype=jnp.float32)

    ref = _reference(emb, summary, ptr, d, scale)

    # Default block size (single tile at this small N).
    out = jax.block_until_ready(global_emb_d_forward(emb, summary, ptr, d, scale))
    assert out.shape == (N,)
    assert jnp.allclose(out, ref, atol=1e-5, rtol=1e-5), "mismatch vs reference"

    # Small block size -> multi-tile grid with a partial final tile (masked writeback).
    out2 = jax.block_until_ready(
        global_emb_d_forward(emb, summary, ptr, d, scale, block_rows=8))
    assert jnp.allclose(out2, ref, atol=1e-5, rtol=1e-5), "mismatch vs reference (tiled)"

    print("KERNEL_OK")
</pallas_src>

<mosaic_0001>
module attributes {stable_mosaic.version = 11 : i64} {
  func.func @kernel(%arg0: i32, %arg1: memref<20x256xf32, #tpu.memory_space<vmem>>, %arg2: memref<2x24xi32, #tpu.memory_space<vmem>>, %arg3: memref<256x24xf32, #tpu.memory_space<vmem>>, %arg4: memref<256x8xf32, #tpu.memory_space<vmem>>, %arg5: memref<24x8xf32, #tpu.memory_space<vmem>>, %arg6: memref<20x8xf32, #tpu.memory_space<vmem>>) attributes {dimension_semantics = [#tpu.dimension_semantics<parallel>], iteration_bounds = array<i64: 1>, scalar_prefetch = 0 : i64, scratch_operands = 0 : i64, tpu.core_type = #tpu.core_type<tc>, window_params = [{transform_indices = @transform_0, window_bounds = array<i64: 20, 256>}, {pipeline_mode = #tpu.pipeline_mode<synchronous>, transform_indices = @transform_1, window_bounds = array<i64: 2, 24>}, {pipeline_mode = #tpu.pipeline_mode<synchronous>, transform_indices = @transform_2, window_bounds = array<i64: 256, 24>}, {pipeline_mode = #tpu.pipeline_mode<synchronous>, transform_indices = @transform_3, window_bounds = array<i64: 256, 8>}, {pipeline_mode = #tpu.pipeline_mode<synchronous>, transform_indices = @transform_4, window_bounds = array<i64: 24, 8>}, {transform_indices = @transform_5, window_bounds = array<i64: 20, 8>}]} {
    %c0 = arith.constant 0 : index
    %c0_0 = arith.constant 0 : index
    %0 = vector.load %arg1[%c0, %c0_0] : memref<20x256xf32, #tpu.memory_space<vmem>>, vector<20x256xf32>
    %1 = arith.mulf %0, %0 : vector<20x256xf32>
    %c0_1 = arith.constant 0 : index
    %c0_2 = arith.constant 0 : index
    %2 = vector.load %arg4[%c0_1, %c0_2] : memref<256x8xf32, #tpu.memory_space<vmem>>, vector<256x8xf32>
    %cst = arith.constant dense<0.000000e+00> : vector<20x8xf32>
    %3 = tpu.matmul %1, %2, %cst {dimension_numbers = #tpu.dot_dimension_numbers<[1], [0], [0], [1], [0, 0, 1, 1], [], []>, precision = #tpu.contract_precision<fp32>} : vector<20x256xf32>, vector<256x8xf32>, vector<20x8xf32> -> vector<20x8xf32>
    %c0_3 = arith.constant 0 : index
    %c0_4 = arith.constant 0 : index
    %4 = vector.load %arg3[%c0_3, %c0_4] : memref<256x24xf32, #tpu.memory_space<vmem>>, vector<256x24xf32>
    %cst_5 = arith.constant dense<0.000000e+00> : vector<20x24xf32>
    %5 = tpu.matmul %0, %4, %cst_5 {dimension_numbers = #tpu.dot_dimension_numbers<[1], [0], [0], [1], [0, 0, 1, 1], [], []>, precision = #tpu.contract_precision<fp32>} : vector<20x256xf32>, vector<256x24xf32>, vector<20x24xf32> -> vector<20x24xf32>
    %6 = tpu.iota {dimensions = array<i32: 0>} : vector<20x1xi32>
    %c20_i32 = arith.constant 20 : i32
    %7 = arith.muli %arg0, %c20_i32 : i32
    %8 = vector.broadcast %7 : i32 to vector<20x1xi32>
    %9 = arith.addi %8, %6 : vector<20x1xi32>
    %c8_i32 = arith.constant 8 : i32
    %10 = vector.broadcast %c8_i32 : i32 to vector<20x1xi32>
    %11 = arith.muli %9, %10 : vector<20x1xi32>
    %c0_6 = arith.constant 0 : index
    %c0_7 = arith.constant 0 : index
    %12 = vector.load %arg2[%c0_6, %c0_7] : memref<2x24xi32, #tpu.memory_space<vmem>>, vector<2x24xi32>
    %13 = vector.extract_strided_slice %12 {offsets = [0, 0], sizes = [1, 24], strides = [1, 1]} : vector<2x24xi32> to vector<1x24xi32>
    %14 = vector.broadcast %11 : vector<20x1xi32> to vector<20x24xi32>
    %15 = vector.broadcast %13 : vector<1x24xi32> to vector<20x24xi32>
    %16 = arith.cmpi sge, %14, %15 : vector<20x24xi32>
    %17 = vector.extract_strided_slice %12 {offsets = [1, 0], sizes = [1, 24], strides = [1, 1]} : vector<2x24xi32> to vector<1x24xi32>
    %18 = vector.broadcast %11 : vector<20x1xi32> to vector<20x24xi32>
    %19 = vector.broadcast %17 : vector<1x24xi32> to vector<20x24xi32>
    %20 = arith.cmpi slt, %18, %19 : vector<20x24xi32>
    %21 = arith.andi %16, %20 : vector<20x24xi1>
    %cst_8 = arith.constant 0.000000e+00 : f32
    %22 = vector.broadcast %cst_8 : f32 to vector<20x24xf32>
    %23 = arith.select %21, %5, %22 : vector<20x24xi1>, vector<20x24xf32>
    %c0_9 = arith.constant 0 : index
    %c0_10 = arith.constant 0 : index
    %24 = vector.load %arg5[%c0_9, %c0_10] : memref<24x8xf32, #tpu.memory_space<vmem>>, vector<24x8xf32>
    %cst_11 = arith.constant dense<0.000000e+00> : vector<20x8xf32>
    %25 = tpu.matmul %23, %24, %cst_11 {dimension_numbers = #tpu.dot_dimension_numbers<[1], [0], [0], [1], [0, 0, 1, 1], [], []>, precision = #tpu.contract_precision<fp32>} : vector<20x24xf32>, vector<24x8xf32>, vector<20x8xf32> -> vector<20x8xf32>
    %cst_12 = arith.constant 1.000000e-24 : f32
    %26 = vector.broadcast %cst_12 : f32 to vector<20x8xf32>
    %27 = arith.maximumf %3, %26 : vector<20x8xf32>
    %28 = math.rsqrt %27 : vector<20x8xf32>
    %29 = arith.mulf %25, %28 : vector<20x8xf32>
    %c0_13 = arith.constant 0 : index
    %c0_14 = arith.constant 0 : index
    %30 = vector.load %arg6[%c0_13, %c0_14] : memref<20x8xf32, #tpu.memory_space<vmem>>, vector<20x8xf32>
    tpu.vector_store %arg6[%c0_13, %c0_14], %29 {strides = array<i32>} : memref<20x8xf32, #tpu.memory_space<vmem>>, vector<20x8xf32>,
    return
  }
  func.func @transform_0(%arg0: i32) -> (i32, i32) {
    %c0_i32 = arith.constant 0 : i32
    %c0_i32_0 = arith.constant 0 : i32
    return %arg0, %c0_i32 : i32, i32
  }
  func.func @transform_1(%arg0: i32) -> (i32, i32) {
    %c0_i32 = arith.constant 0 : i32
    %c0_i32_0 = arith.constant 0 : i32
    %c0_i32_1 = arith.constant 0 : i32
    return %c0_i32, %c0_i32_0 : i32, i32
  }
  func.func @transform_2(%arg0: i32) -> (i32, i32) {
    %c0_i32 = arith.constant 0 : i32
    %c0_i32_0 = arith.constant 0 : i32
    %c0_i32_1 = arith.constant 0 : i32
    return %c0_i32, %c0_i32_0 : i32, i32
  }
  func.func @transform_3(%arg0: i32) -> (i32, i32) {
    %c0_i32 = arith.constant 0 : i32
    %c0_i32_0 = arith.constant 0 : i32
    %c0_i32_1 = arith.constant 0 : i32
    return %c0_i32, %c0_i32_0 : i32, i32
  }
  func.func @transform_4(%arg0: i32) -> (i32, i32) {
    %c0_i32 = arith.constant 0 : i32
    %c0_i32_0 = arith.constant 0 : i32
    %c0_i32_1 = arith.constant 0 : i32
    return %c0_i32, %c0_i32_0 : i32, i32
  }
  func.func @transform_5(%arg0: i32) -> (i32, i32) {
    %c0_i32 = arith.constant 0 : i32
    %c0_i32_0 = arith.constant 0 : i32
    return %arg0, %c0_i32 : i32, i32
  }
}

</mosaic_0001>

<llo_original>
// kernel: tpu_custom_call.1
$region0: #{tpu_custom_call.1}
  #allocation0 [shape = 'u32[]', space=smem, size = 0x4, offset = 0x4, fixed_abs, tag = 'smem constant byte address 0x4 - core index']
  #allocation1 [shape = 'u32[72,128]{1,0:T(1,128)}', space=vmem, size = 0x9000, scoped, tag = 'internal scratch']
  %s0 = inlined_call_operand.vmem [shape: f32[20,256], index: 0, kind: input, shape index: {}]
  %s1 = inlined_call_operand.vmem [shape: s32[2,24], index: 1, kind: input, shape index: {}]
  %s2 = inlined_call_operand.vmem [shape: f32[256,24], index: 2, kind: input, shape index: {}]
  %s3 = inlined_call_operand.vmem [shape: f32[256,8], index: 3, kind: input, shape index: {}]
  %s4 = inlined_call_operand.vmem [shape: f32[24,8], index: 4, kind: input, shape index: {}]
  %s5 = inlined_call_operand.vmem [shape: f32[20,8], index: 5, kind: output, shape index: {}]
  %s6 = sld [smem:[#allocation0]]
  $region30: #{tpu_custom_call.1} parent=0
    _
  %s8 = ssub.s32 1, %s6
  %s9 = scalar_select 0, %s8, %s6
  // Predicated region
  $region2: #{tpu_custom_call.1} parent=0 // pred_check
    _
  $region3: #{tpu_custom_call.1} parent=0 // pred_check_branch
    %11 = sbr.rel (0) target = $region5
  $region4: #{tpu_custom_call.1} parent=0 // pred_region
    _
  $region5: #{tpu_custom_call.1} parent=0 // pred_fallthru
    _
  // Predicated region
  $region6: #{tpu_custom_call.1} parent=0 // pred_check
    _
  $region7: #{tpu_custom_call.1} parent=0 // pred_check_branch
    %13 = sbr.rel (0) target = $region9
  $region8: #{tpu_custom_call.1} parent=0 // pred_region
    _
  $region9: #{tpu_custom_call.1} parent=0 // pred_fallthru
    _
  // Predicated region
  $region10: #{tpu_custom_call.1} parent=0 // pred_check
    _
  $region11: #{tpu_custom_call.1} parent=0 // pred_check_branch
    %15 = sbr.rel (0) target = $region13
  $region12: #{tpu_custom_call.1} parent=0 // pred_region
    _
  $region13: #{tpu_custom_call.1} parent=0 // pred_fallthru
    _
  // Predicated region
  $region14: #{tpu_custom_call.1} parent=0 // pred_check
    _
  $region15: #{tpu_custom_call.1} parent=0 // pred_check_branch
    %17 = sbr.rel (0) target = $region17
  $region16: #{tpu_custom_call.1} parent=0 // pred_region
    _
  $region17: #{tpu_custom_call.1} parent=0 // pred_fallthru
    _
  // Predicated region
  $region18: #{tpu_custom_call.1} parent=0 // pred_check
    _
  $region19: #{tpu_custom_call.1} parent=0 // pred_check_branch
    %19 = sbr.rel (0) target = $region21
  $region20: #{tpu_custom_call.1} parent=0 // pred_region
    _
  $region21: #{tpu_custom_call.1} parent=0 // pred_fallthru
    _
  %v20 = vld [vmem:[%s0] sm:$0xff]
  %v21 = vld [vmem:[%s0 + $0x8] sm:$0xff]
  %v22 = vld [vmem:[%s0 + $0x10] sm:$0xff]
  %v23 = vld [vmem:[%s0 + $0x18] sm:$0xff]
  %v24 = vld [vmem:[%s0 + $0x20] sm:$0xf]
  %v25 = vld [vmem:[%s0 + $0x28] sm:$0xf]
  %v26 = vmul.f32 %v20, %v20
  %v27 = vmul.f32 %v21, %v21
  %v28 = vmul.f32 %v22, %v22
  %v29 = vmul.f32 %v23, %v23
  %v30 = vmul.f32 %v24, %v24
  %v31 = vmul.f32 %v25, %v25
  %v32 = vld [vmem:[%s3] sm:$0xff]
  %v33 = vld [vmem:[%s3 + $0x8] sm:$0xff]
  %v34 = vld [vmem:[%s3 + $0x10] sm:$0xff]
  %v35 = vld [vmem:[%s3 + $0x18] sm:$0xff]
  %v36 = vld [vmem:[%s3 + $0x20] sm:$0xff]
  %v37 = vld [vmem:[%s3 + $0x28] sm:$0xff]
  %v38 = vld [vmem:[%s3 + $0x30] sm:$0xff]
  %v39 = vld [vmem:[%s3 + $0x38] sm:$0xff]
  %v40 = vld [vmem:[%s3 + $0x40] sm:$0xff]
  %v41 = vld [vmem:[%s3 + $0x48] sm:$0xff]
  %v42 = vld [vmem:[%s3 + $0x50] sm:$0xff]
  %v43 = vld [vmem:[%s3 + $0x58] sm:$0xff]
  %v44 = vld [vmem:[%s3 + $0x60] sm:$0xff]
  %v45 = vld [vmem:[%s3 + $0x68] sm:$0xff]
  %v46 = vld [vmem:[%s3 + $0x70] sm:$0xff]
  %v47 = vld [vmem:[%s3 + $0x78] sm:$0xff]
  %v48 = vld [vmem:[%s3 + $0x80] sm:$0xff]
  %v49 = vld [vmem:[%s3 + $0x88] sm:$0xff]
  %v50 = vld [vmem:[%s3 + $0x90] sm:$0xff]
  %v51 = vld [vmem:[%s3 + $0x98] sm:$0xff]
  %v52 = vld [vmem:[%s3 + $0xa0] sm:$0xff]
  %v53 = vld [vmem:[%s3 + $0xa8] sm:$0xff]
  %v54 = vld [vmem:[%s3 + $0xb0] sm:$0xff]
  %v55 = vld [vmem:[%s3 + $0xb8] sm:$0xff]
  %v56 = vld [vmem:[%s3 + $0xc0] sm:$0xff]
  %v57 = vld [vmem:[%s3 + $0xc8] sm:$0xff]
  %v58 = vld [vmem:[%s3 + $0xd0] sm:$0xff]
  %v59 = vld [vmem:[%s3 + $0xd8] sm:$0xff]
  %v60 = vld [vmem:[%s3 + $0xe0] sm:$0xff]
  %v61 = vld [vmem:[%s3 + $0xe8] sm:$0xff]
  %v62 = vld [vmem:[%s3 + $0xf0] sm:$0xff]
  %v63 = vld [vmem:[%s3 + $0xf8] sm:$0xff]
  %v64 = vand.u32 %v47, 4294901760
  %65 = vmatpush.msra.mxu0 %v64
  %v66 = vand.u32 %v46, 4294901760
  %67 = vmatpush.msra.mxu0 %v66
  %v68 = vand.u32 %v45, 4294901760
  %69 = vmatpush.msra.mxu0 %v68
  %v70 = vand.u32 %v44, 4294901760
  %71 = vmatpush.msra.mxu0 %v70
  %v72 = vand.u32 %v43, 4294901760
  %73 = vmatpush.msra.mxu0 %v72
  %v74 = vand.u32 %v42, 4294901760
  %75 = vmatpush.msra.mxu0 %v74
  %v76 = vand.u32 %v41, 4294901760
  %77 = vmatpush.msra.mxu0 %v76
  %v78 = vand.u32 %v40, 4294901760
  %79 = vmatpush.msra.mxu0 %v78
  %v80 = vand.u32 %v39, 4294901760
  %81 = vmatpush.msra.mxu0 %v80
  %v82 = vand.u32 %v38, 4294901760
  %83 = vmatpush.msra.mxu0 %v82
  %v84 = vand.u32 %v37, 4294901760
  %85 = vmatpush.msra.mxu0 %v84
  %v86 = vand.u32 %v36, 4294901760
  %87 = vmatpush.msra.mxu0 %v86
  %v88 = vand.u32 %v35, 4294901760
  %89 = vmatpush.msra.mxu0 %v88
  %v90 = vand.u32 %v34, 4294901760
  %91 = vmatpush.msra.mxu0 %v90
  %v92 = vand.u32 %v33, 4294901760
  %93 = vmatpush.msra.mxu0 %v92
  %v94 = vand.u32 %v32, 4294901760
  %95 = vmatpush.msra.mxu0 %v94
  %v96 = vand.u32 %v26, 4294901760
  %v97 = vsub.f32 %v26, %v96
  %v98 = vand.u32 %v97, 4294901760
  %v99 = vsub.f32 %v97, %v98
  %v100 = vand.u32 %v99, 4294901760
  %101 = vmatmul.f32.gmra.mxu0 %v100
  %v102 = vpop.f32.mrf.mxu0
  %v103 = vadd.f32 0.0, %v102
  %v104 = vand.u32 %v28, 4294901760
  %v105 = vsub.f32 %v28, %v104
  %v106 = vand.u32 %v105, 4294901760
  %v107 = vsub.f32 %v105, %v106
  %v108 = vand.u32 %v107, 4294901760
  %109 = vmatmul.f32.gmra.mxu0 %v108
  %v110 = vpop.f32.mrf.mxu0
  %v111 = vadd.f32 0.0, %v110
  %v112 = vand.u32 %v30, 4294901760
  %v113 = vsub.f32 %v30, %v112
  %v114 = vand.u32 %v113, 4294901760
  %v115 = vsub.f32 %v113, %v114
  %v116 = vand.u32 %v115, 4294901760
  %117 = vmatmul.f32.gmra.mxu0 %v116
  %v118 = vpop.f32.mrf.mxu0
  %v119 = vadd.f32 0.0, %v118
  %120 = vdwg.mxu0
  %v121 = vand.u32 %v47, 4294901760
  %v122 = vsub.f32 %v47, %v121
  %v123 = vand.u32 %v122, 4294901760
  %v124 = vsub.f32 %v122, %v123
  %v125 = vand.u32 %v124, 4294901760
  %126 = vmatpush.msra.mxu0 %v125
  %v127 = vand.u32 %v46, 4294901760
  %v128 = vsub.f32 %v46, %v127
  %v129 = vand.u32 %v128, 4294901760
  %v130 = vsub.f32 %v128, %v129
  %v131 = vand.u32 %v130, 4294901760
  %132 = vmatpush.msra.mxu0 %v131
  %v133 = vand.u32 %v45, 4294901760
  %v134 = vsub.f32 %v45, %v133
  %v135 = vand.u32 %v134, 4294901760
  %v136 = vsub.f32 %v134, %v135
  %v137 = vand.u32 %v136, 4294901760
  %138 = vmatpush.msra.mxu0 %v137
  %v139 = vand.u32 %v44, 4294901760
  %v140 = vsub.f32 %v44, %v139
  %v141 = vand.u32 %v140, 4294901760
  %v142 = vsub.f32 %v140, %v141
  %v143 = vand.u32 %v142, 4294901760
  %144 = vmatpush.msra.mxu0 %v143
  %v145 = vand.u32 %v43, 4294901760
  %v146 = vsub.f32 %v43, %v145
  %v147 = vand.u32 %v146, 4294901760
  %v148 = vsub.f32 %v146, %v147
  %v149 = vand.u32 %v148, 4294901760
  %150 = vmatpush.msra.mxu0 %v149
  %v151 = vand.u32 %v42, 4294901760
  %v152 = vsub.f32 %v42, %v151
  %v153 = vand.u32 %v152, 4294901760
  %v154 = vsub.f32 %v152, %v153
  %v155 = vand.u32 %v154, 4294901760
  %156 = vmatpush.msra.mxu0 %v155
  %v157 = vand.u32 %v41, 4294901760
  %v158 = vsub.f32 %v41, %v157
  %v159 = vand.u32 %v158, 4294901760
  %v160 = vsub.f32 %v158, %v159
  %v161 = vand.u32 %v160, 4294901760
  %162 = vmatpush.msra.mxu0 %v161
  %v163 = vand.u32 %v40, 4294901760
  %v164 = vsub.f32 %v40, %v163
  %v165 = vand.u32 %v164, 4294901760
  %v166 = vsub.f32 %v164, %v165
  %v167 = vand.u32 %v166, 4294901760
  %168 = vmatpush.msra.mxu0 %v167
  %v169 = vand.u32 %v39, 4294901760
  %v170 = vsub.f32 %v39, %v169
  %v171 = vand.u32 %v170, 4294901760
  %v172 = vsub.f32 %v170, %v171
  %v173 = vand.u32 %v172, 4294901760
  %174 = vmatpush.msra.mxu0 %v173
  %v175 = vand.u32 %v38, 4294901760
  %v176 = vsub.f32 %v38, %v175
  %v177 = vand.u32 %v176, 4294901760
  %v178 = vsub.f32 %v176, %v177
  %v179 = vand.u32 %v178, 4294901760
  %180 = vmatpush.msra.mxu0 %v179
  %v181 = vand.u32 %v37, 4294901760
  %v182 = vsub.f32 %v37, %v181
  %v183 = vand.u32 %v182, 4294901760
  %v184 = vsub.f32 %v182, %v183
  %v185 = vand.u32 %v184, 4294901760
  %186 = vmatpush.msra.mxu0 %v185
  %v187 = vand.u32 %v36, 4294901760
  %v188 = vsub.f32 %v36, %v187
  %v189 = vand.u32 %v188, 4294901760
  %v190 = vsub.f32 %v188, %v189
  %v191 = vand.u32 %v190, 4294901760
  %192 = vmatpush.msra.mxu0 %v191
  %v193 = vand.u32 %v35, 4294901760
  %v194 = vsub.f32 %v35, %v193
  %v195 = vand.u32 %v194, 4294901760
  %v196 = vsub.f32 %v194, %v195
  %v197 = vand.u32 %v196, 4294901760
  %198 = vmatpush.msra.mxu0 %v197
  %v199 = vand.u32 %v34, 4294901760
  %v200 = vsub.f32 %v34, %v199
  %v201 = vand.u32 %v200, 4294901760
  %v202 = vsub.f32 %v200, %v201
  %v203 = vand.u32 %v202, 4294901760
  %204 = vmatpush.msra.mxu0 %v203
  %v205 = vand.u32 %v33, 4294901760
  %v206 = vsub.f32 %v33, %v205
  %v207 = vand.u32 %v206, 4294901760
  %v208 = vsub.f32 %v206, %v207
  %v209 = vand.u32 %v208, 4294901760
  %210 = vmatpush.msra.mxu0 %v209
  %v211 = vand.u32 %v32, 4294901760
  %v212 = vsub.f32 %v32, %v211
  %v213 = vand.u32 %v212, 4294901760
  %v214 = vsub.f32 %v212, %v213
  %v215 = vand.u32 %v214, 4294901760
  %216 = vmatpush.msra.mxu0 %v215
  %v217 = vand.u32 %v26, 4294901760
  %218 = vmatmul.f32.gmra.mxu0 %v217
  %v219 = vpop.f32.mrf.mxu0
  %v220 = vadd.f32 %v103, %v219
  %v221 = vand.u32 %v28, 4294901760
  %222 = vmatmul.f32.gmra.mxu0 %v221
  %v223 = vpop.f32.mrf.mxu0
  %v224 = vadd.f32 %v111, %v223
  %v225 = vand.u32 %v30, 4294901760
  %226 = vmatmul.f32.gmra.mxu0 %v225
  %v227 = vpop.f32.mrf.mxu0
  %v228 = vadd.f32 %v119, %v227
  %229 = vdwg.mxu0
  %v230 = vand.u32 %v47, 4294901760
  %v231 = vsub.f32 %v47, %v230
  %232 = vmatpush.msra.mxu0 %v231
  %v233 = vand.u32 %v46, 4294901760
  %v234 = vsub.f32 %v46, %v233
  %235 = vmatpush.msra.mxu0 %v234
  %v236 = vand.u32 %v45, 4294901760
  %v237 = vsub.f32 %v45, %v236
  %238 = vmatpush.msra.mxu0 %v237
  %v239 = vand.u32 %v44, 4294901760
  %v240 = vsub.f32 %v44, %v239
  %241 = vmatpush.msra.mxu0 %v240
  %v242 = vand.u32 %v43, 4294901760
  %v243 = vsub.f32 %v43, %v242
  %244 = vmatpush.msra.mxu0 %v243
  %v245 = vand.u32 %v42, 4294901760
  %v246 = vsub.f32 %v42, %v245
  %247 = vmatpush.msra.mxu0 %v246
  %v248 = vand.u32 %v41, 4294901760
  %v249 = vsub.f32 %v41, %v248
  %250 = vmatpush.msra.mxu0 %v249
  %v251 = vand.u32 %v40, 4294901760
  %v252 = vsub.f32 %v40, %v251
  %253 = vmatpush.msra.mxu0 %v252
  %v254 = vand.u32 %v39, 4294901760
  %v255 = vsub.f32 %v39, %v254
  %256 = vmatpush.msra.mxu0 %v255
  %v257 = vand.u32 %v38, 4294901760
  %v258 = vsub.f32 %v38, %v257
  %259 = vmatpush.msra.mxu0 %v258
  %v260 = vand.u32 %v37, 4294901760
  %v261 = vsub.f32 %v37, %v260
  %262 = vmatpush.msra.mxu0 %v261
  %v263 = vand.u32 %v36, 4294901760
  %v264 = vsub.f32 %v36, %v263
  %265 = vmatpush.msra.mxu0 %v264
  %v266 = vand.u32 %v35, 4294901760
  %v267 = vsub.f32 %v35, %v266
  %268 = vmatpush.msra.mxu0 %v267
  %v269 = vand.u32 %v34, 4294901760
  %v270 = vsub.f32 %v34, %v269
  %271 = vmatpush.msra.mxu0 %v270
  %v272 = vand.u32 %v33, 4294901760
  %v273 = vsub.f32 %v33, %v272
  %274 = vmatpush.msra.mxu0 %v273
  %v275 = vand.u32 %v32, 4294901760
  %v276 = vsub.f32 %v32, %v275
  %277 = vmatpush.msra.mxu0 %v276
  %v278 = vand.u32 %v26, 4294901760
  %v279 = vsub.f32 %v26, %v278
  %280 = vmatmul.f32.gmra.mxu0 %v279
  %v281 = vpop.f32.mrf.mxu0
  %v282 = vadd.f32 %v220, %v281
  %v283 = vand.u32 %v28, 4294901760
  %v284 = vsub.f32 %v28, %v283
  %285 = vmatmul.f32.gmra.mxu0 %v284
  %v286 = vpop.f32.mrf.mxu0
  %v287 = vadd.f32 %v224, %v286
  %v288 = vand.u32 %v30, 4294901760
  %v289 = vsub.f32 %v30, %v288
  %290 = vmatmul.f32.gmra.mxu0 %v289
  %v291 = vpop.f32.mrf.mxu0
  %v292 = vadd.f32 %v228, %v291
  %293 = vdwg.mxu0
  %v294 = vand.u32 %v47, 4294901760
  %295 = vmatpush.msra.mxu0 %v294
  %v296 = vand.u32 %v46, 4294901760
  %297 = vmatpush.msra.mxu0 %v296
  %v298 = vand.u32 %v45, 4294901760
  %299 = vmatpush.msra.mxu0 %v298
  %v300 = vand.u32 %v44, 4294901760
  %301 = vmatpush.msra.mxu0 %v300
  %v302 = vand.u32 %v43, 4294901760
  %303 = vmatpush.msra.mxu0 %v302
  %v304 = vand.u32 %v42, 4294901760
  %305 = vmatpush.msra.mxu0 %v304
  %v306 = vand.u32 %v41, 4294901760
  %307 = vmatpush.msra.mxu0 %v306
  %v308 = vand.u32 %v40, 4294901760
  %309 = vmatpush.msra.mxu0 %v308
  %v310 = vand.u32 %v39, 4294901760
  %311 = vmatpush.msra.mxu0 %v310
  %v312 = vand.u32 %v38, 4294901760
  %313 = vmatpush.msra.mxu0 %v312
  %v314 = vand.u32 %v37, 4294901760
  %315 = vmatpush.msra.mxu0 %v314
  %v316 = vand.u32 %v36, 4294901760
  %317 = vmatpush.msra.mxu0 %v316
  %v318 = vand.u32 %v35, 4294901760
  %319 = vmatpush.msra.mxu0 %v318
  %v320 = vand.u32 %v34, 4294901760
  %321 = vmatpush.msra.mxu0 %v320
  %v322 = vand.u32 %v33, 4294901760
  %323 = vmatpush.msra.mxu0 %v322
  %v324 = vand.u32 %v32, 4294901760
  %325 = vmatpush.msra.mxu0 %v324
  %v326 = vand.u32 %v26, 4294901760
  %v327 = vsub.f32 %v26, %v326
  %v328 = vand.u32 %v327, 4294901760
  %329 = vmatmul.f32.gmra.mxu0 %v328
  %v330 = vpop.f32.mrf.mxu0
  %v331 = vadd.f32 %v282, %v330
  %v332 = vand.u32 %v28, 4294901760
  %v333 = vsub.f32 %v28, %v332
  %v334 = vand.u32 %v333, 4294901760
  %335 = vmatmul.f32.gmra.mxu0 %v334
  %v336 = vpop.f32.mrf.mxu0
  %v337 = vadd.f32 %v287, %v336
  %v338 = vand.u32 %v30, 4294901760
  %v339 = vsub.f32 %v30, %v338
  %v340 = vand.u32 %v339, 4294901760
  %341 = vmatmul.f32.gmra.mxu0 %v340
  %v342 = vpop.f32.mrf.mxu0
  %v343 = vadd.f32 %v292, %v342
  %344 = vdwg.mxu0
  %v345 = vand.u32 %v47, 4294901760
  %v346 = vsub.f32 %v47, %v345
  %v347 = vand.u32 %v346, 4294901760
  %348 = vmatpush.msra.mxu0 %v347
  %v349 = vand.u32 %v46, 4294901760
  %v350 = vsub.f32 %v46, %v349
  %v351 = vand.u32 %v350, 4294901760
  %352 = vmatpush.msra.mxu0 %v351
  %v353 = vand.u32 %v45, 4294901760
  %v354 = vsub.f32 %v45, %v353
  %v355 = vand.u32 %v354, 4294901760
  %356 = vmatpush.msra.mxu0 %v355
  %v357 = vand.u32 %v44, 4294901760
  %v358 = vsub.f32 %v44, %v357
  %v359 = vand.u32 %v358, 4294901760
  %360 = vmatpush.msra.mxu0 %v359
  %v361 = vand.u32 %v43, 4294901760
  %v362 = vsub.f32 %v43, %v361
  %v363 = vand.u32 %v362, 4294901760
  %364 = vmatpush.msra.mxu0 %v363
  %v365 = vand.u32 %v42, 4294901760
  %v366 = vsub.f32 %v42, %v365
  %v367 = vand.u32 %v366, 4294901760
  %368 = vmatpush.msra.mxu0 %v367
  %v369 = vand.u32 %v41, 4294901760
  %v370 = vsub.f32 %v41, %v369
  %v371 = vand.u32 %v370, 4294901760
  %372 = vmatpush.msra.mxu0 %v371
  %v373 = vand.u32 %v40, 4294901760
  %v374 = vsub.f32 %v40, %v373
  %v375 = vand.u32 %v374, 4294901760
  %376 = vmatpush.msra.mxu0 %v375
  %v377 = vand.u32 %v39, 4294901760
  %v378 = vsub.f32 %v39, %v377
  %v379 = vand.u32 %v378, 4294901760
  %380 = vmatpush.msra.mxu0 %v379
  %v381 = vand.u32 %v38, 4294901760
  %v382 = vsub.f32 %v38, %v381
  %v383 = vand.u32 %v382, 4294901760
  %384 = vmatpush.msra.mxu0 %v383
  %v385 = vand.u32 %v37, 4294901760
  %v386 = vsub.f32 %v37, %v385
  %v387 = vand.u32 %v386, 4294901760
  %388 = vmatpush.msra.mxu0 %v387
  %v389 = vand.u32 %v36, 4294901760
  %v390 = vsub.f32 %v36, %v389
  %v391 = vand.u32 %v390, 4294901760
  %392 = vmatpush.msra.mxu0 %v391
  %v393 = vand.u32 %v35, 4294901760
  %v394 = vsub.f32 %v35, %v393
  %v395 = vand.u32 %v394, 4294901760
  %396 = vmatpush.msra.mxu0 %v395
  %v397 = vand.u32 %v34, 4294901760
  %v398 = vsub.f32 %v34, %v397
  %v399 = vand.u32 %v398, 4294901760
  %400 = vmatpush.msra.mxu0 %v399
  %v401 = vand.u32 %v33, 4294901760
  %v402 = vsub.f32 %v33, %v401
  %v403 = vand.u32 %v402, 4294901760
  %404 = vmatpush.msra.mxu0 %v403
  %v405 = vand.u32 %v32, 4294901760
  %v406 = vsub.f32 %v32, %v405
  %v407 = vand.u32 %v406, 4294901760
  %408 = vmatpush.msra.mxu0 %v407
  %v409 = vand.u32 %v26, 4294901760
  %410 = vmatmul.f32.gmra.mxu0 %v409
  %v411 = vpop.f32.mrf.mxu0
  %v412 = vadd.f32 %v331, %v411
  %v413 = vand.u32 %v28, 4294901760
  %414 = vmatmul.f32.gmra.mxu0 %v413
  %v415 = vpop.f32.mrf.mxu0
  %v416 = vadd.f32 %v337, %v415
  %v417 = vand.u32 %v30, 4294901760
  %418 = vmatmul.f32.gmra.mxu0 %v417
  %v419 = vpop.f32.mrf.mxu0
  %v420 = vadd.f32 %v343, %v419
  %421 = vdwg.mxu0
  %v422 = vand.u32 %v47, 4294901760
  %423 = vmatpush.msra.mxu0 %v422
  %v424 = vand.u32 %v46, 4294901760
  %425 = vmatpush.msra.mxu0 %v424
  %v426 = vand.u32 %v45, 4294901760
  %427 = vmatpush.msra.mxu0 %v426
  %v428 = vand.u32 %v44, 4294901760
  %429 = vmatpush.msra.mxu0 %v428
  %v430 = vand.u32 %v43, 4294901760
  %431 = vmatpush.msra.mxu0 %v430
  %v432 = vand.u32 %v42, 4294901760
  %433 = vmatpush.msra.mxu0 %v432
  %v434 = vand.u32 %v41, 4294901760
  %435 = vmatpush.msra.mxu0 %v434
  %v436 = vand.u32 %v40, 4294901760
  %437 = vmatpush.msra.mxu0 %v436
  %v438 = vand.u32 %v39, 4294901760
  %439 = vmatpush.msra.mxu0 %v438
  %v440 = vand.u32 %v38, 4294901760
  %441 = vmatpush.msra.mxu0 %v440
  %v442 = vand.u32 %v37, 4294901760
  %443 = vmatpush.msra.mxu0 %v442
  %v444 = vand.u32 %v36, 4294901760
  %445 = vmatpush.msra.mxu0 %v444
  %v446 = vand.u32 %v35, 4294901760
  %447 = vmatpush.msra.mxu0 %v446
  %v448 = vand.u32 %v34, 4294901760
  %449 = vmatpush.msra.mxu0 %v448
  %v450 = vand.u32 %v33, 4294901760
  %451 = vmatpush.msra.mxu0 %v450
  %v452 = vand.u32 %v32, 4294901760
  %453 = vmatpush.msra.mxu0 %v452
  %v454 = vand.u32 %v26, 4294901760
  %455 = vmatmul.f32.gmra.mxu0 %v454
  %v456 = vpop.f32.mrf.mxu0
  %v457 = vadd.f32 %v412, %v456
  %v458 = vand.u32 %v28, 4294901760
  %459 = vmatmul.f32.gmra.mxu0 %v458
  %v460 = vpop.f32.mrf.mxu0
  %v461 = vadd.f32 %v416, %v460
  %v462 = vand.u32 %v30, 4294901760
  %463 = vmatmul.f32.gmra.mxu0 %v462
  %v464 = vpop.f32.mrf.mxu0
  %v465 = vadd.f32 %v420, %v464
  %466 = vdwg.mxu0
  %v467 = vand.u32 %v63, 4294901760
  %468 = vmatpush.msra.mxu0 %v467
  %v469 = vand.u32 %v62, 4294901760
  %470 = vmatpush.msra.mxu0 %v469
  %v471 = vand.u32 %v61, 4294901760
  %472 = vmatpush.msra.mxu0 %v471
  %v473 = vand.u32 %v60, 4294901760
  %474 = vmatpush.msra.mxu0 %v473
  %v475 = vand.u32 %v59, 4294901760
  %476 = vmatpush.msra.mxu0 %v475
  %v477 = vand.u32 %v58, 4294901760
  %478 = vmatpush.msra.mxu0 %v477
  %v479 = vand.u32 %v57, 4294901760
  %480 = vmatpush.msra.mxu0 %v479
  %v481 = vand.u32 %v56, 4294901760
  %482 = vmatpush.msra.mxu0 %v481
  %v483 = vand.u32 %v55, 4294901760
  %484 = vmatpush.msra.mxu0 %v483
  %v485 = vand.u32 %v54, 4294901760
  %486 = vmatpush.msra.mxu0 %v485
  %v487 = vand.u32 %v53, 4294901760
  %488 = vmatpush.msra.mxu0 %v487
  %v489 = vand.u32 %v52, 4294901760
  %490 = vmatpush.msra.mxu0 %v489
  %v491 = vand.u32 %v51, 4294901760
  %492 = vmatpush.msra.mxu0 %v491
  %v493 = vand.u32 %v50, 4294901760
  %494 = vmatpush.msra.mxu0 %v493
  %v495 = vand.u32 %v49, 4294901760
  %496 = vmatpush.msra.mxu0 %v495
  %v497 = vand.u32 %v48, 4294901760
  %498 = vmatpush.msra.mxu0 %v497
  %v499 = vand.u32 %v27, 4294901760
  %v500 = vsub.f32 %v27, %v499
  %v501 = vand.u32 %v500, 4294901760
  %v502 = vsub.f32 %v500, %v501
  %v503 = vand.u32 %v502, 4294901760
  %504 = vmatmul.f32.gmra.mxu0 %v503
  %v505 = vpop.f32.mrf.mxu0
  %v506 = vadd.f32 %v457, %v505
  %v507 = vand.u32 %v29, 4294901760
  %v508 = vsub.f32 %v29, %v507
  %v509 = vand.u32 %v508, 4294901760
  %v510 = vsub.f32 %v508, %v509
  %v511 = vand.u32 %v510, 4294901760
  %512 = vmatmul.f32.gmra.mxu0 %v511
  %v513 = vpop.f32.mrf.mxu0
  %v514 = vadd.f32 %v461, %v513
  %v515 = vand.u32 %v31, 4294901760
  %v516 = vsub.f32 %v31, %v515
  %v517 = vand.u32 %v516, 4294901760
  %v518 = vsub.f32 %v516, %v517
  %v519 = vand.u32 %v518, 4294901760
  %520 = vmatmul.f32.gmra.mxu0 %v519
  %v521 = vpop.f32.mrf.mxu0
  %v522 = vadd.f32 %v465, %v521
  %523 = vdwg.mxu0
  %v524 = vand.u32 %v63, 4294901760
  %v525 = vsub.f32 %v63, %v524
  %v526 = vand.u32 %v525, 4294901760
  %v527 = vsub.f32 %v525, %v526
  %v528 = vand.u32 %v527, 4294901760
  %529 = vmatpush.msra.mxu0 %v528
  %v530 = vand.u32 %v62, 4294901760
  %v531 = vsub.f32 %v62, %v530
  %v532 = vand.u32 %v531, 4294901760
  %v533 = vsub.f32 %v531, %v532
  %v534 = vand.u32 %v533, 4294901760
  %535 = vmatpush.msra.mxu0 %v534
  %v536 = vand.u32 %v61, 4294901760
  %v537 = vsub.f32 %v61, %v536
  %v538 = vand.u32 %v537, 4294901760
  %v539 = vsub.f32 %v537, %v538
  %v540 = vand.u32 %v539, 4294901760
  %541 = vmatpush.msra.mxu0 %v540
  %v542 = vand.u32 %v60, 4294901760
  %v543 = vsub.f32 %v60, %v542
  %v544 = vand.u32 %v543, 4294901760
  %v545 = vsub.f32 %v543, %v544
  %v546 = vand.u32 %v545, 4294901760
  %547 = vmatpush.msra.mxu0 %v546
  %v548 = vand.u32 %v59, 4294901760
  %v549 = vsub.f32 %v59, %v548
  %v550 = vand.u32 %v549, 4294901760
  %v551 = vsub.f32 %v549, %v550
  %v552 = vand.u32 %v551, 4294901760
  %553 = vmatpush.msra.mxu0 %v552
  %v554 = vand.u32 %v58, 4294901760
  %v555 = vsub.f32 %v58, %v554
  %v556 = vand.u32 %v555, 4294901760
  %v557 = vsub.f32 %v555, %v556
  %v558 = vand.u32 %v557, 4294901760
  %559 = vmatpush.msra.mxu0 %v558
  %v560 = vand.u32 %v57, 4294901760
  %v561 = vsub.f32 %v57, %v560
  %v562 = vand.u32 %v561, 4294901760
  %v563 = vsub.f32 %v561, %v562
  %v564 = vand.u32 %v563, 4294901760
  %565 = vmatpush.msra.mxu0 %v564
  %v566 = vand.u32 %v56, 4294901760
  %v567 = vsub.f32 %v56, %v566
  %v568 = vand.u32 %v567, 4294901760
  %v569 = vsub.f32 %v567, %v568
  %v570 = vand.u32 %v569, 4294901760
  %571 = vmatpush.msra.mxu0 %v570
  %v572 = vand.u32 %v55, 4294901760
  %v573 = vsub.f32 %v55, %v572
  %v574 = vand.u32 %v573, 4294901760
  %v575 = vsub.f32 %v573, %v574
  %v576 = vand.u32 %v575, 4294901760
  %577 = vmatpush.msra.mxu0 %v576
  %v578 = vand.u32 %v54, 4294901760
  %v579 = vsub.f32 %v54, %v578
  %v580 = vand.u32 %v579, 4294901760
  %v581 = vsub.f32 %v579, %v580
  %v582 = vand.u32 %v581, 4294901760
  %583 = vmatpush.msra.mxu0 %v582
  %v584 = vand.u32 %v53, 4294901760
  %v585 = vsub.f32 %v53, %v584
  %v586 = vand.u32 %v585, 4294901760
  %v587 = vsub.f32 %v585, %v586
  %v588 = vand.u32 %v587, 4294901760
  %589 = vmatpush.msra.mxu0 %v588
  %v590 = vand.u32 %v52, 4294901760
  %v591 = vsub.f32 %v52, %v590
  %v592 = vand.u32 %v591, 4294901760
  %v593 = vsub.f32 %v591, %v592
  %v594 = vand.u32 %v593, 4294901760
  %595 = vmatpush.msra.mxu0 %v594
  %v596 = vand.u32 %v51, 4294901760
  %v597 = vsub.f32 %v51, %v596
  %v598 = vand.u32 %v597, 4294901760
  %v599 = vsub.f32 %v597, %v598
  %v600 = vand.u32 %v599, 4294901760
  %601 = vmatpush.msra.mxu0 %v600
  %v602 = vand.u32 %v50, 4294901760
  %v603 = vsub.f32 %v50, %v602
  %v604 = vand.u32 %v603, 4294901760
  %v605 = vsub.f32 %v603, %v604
  %v606 = vand.u32 %v605, 4294901760
  %607 = vmatpush.msra.mxu0 %v606
  %v608 = vand.u32 %v49, 4294901760
  %v609 = vsub.f32 %v49, %v608
  %v610 = vand.u32 %v609, 4294901760
  %v611 = vsub.f32 %v609, %v610
  %v612 = vand.u32 %v611, 4294901760
  %613 = vmatpush.msra.mxu0 %v612
  %v614 = vand.u32 %v48, 4294901760
  %v615 = vsub.f32 %v48, %v614
  %v616 = vand.u32 %v615, 4294901760
  %v617 = vsub.f32 %v615, %v616
  %v618 = vand.u32 %v617, 4294901760
  %619 = vmatpush.msra.mxu0 %v618
  %v620 = vand.u32 %v27, 4294901760
  %621 = vmatmul.f32.gmra.mxu0 %v620
  %v622 = vpop.f32.mrf.mxu0
  %v623 = vadd.f32 %v506, %v622
  %v624 = vand.u32 %v29, 4294901760
  %625 = vmatmul.f32.gmra.mxu0 %v624
  %v626 = vpop.f32.mrf.mxu0
  %v627 = vadd.f32 %v514, %v626
  %v628 = vand.u32 %v31, 4294901760
  %629 = vmatmul.f32.gmra.mxu0 %v628
  %v630 = vpop.f32.mrf.mxu0
  %v631 = vadd.f32 %v522, %v630
  %632 = vdwg.mxu0
  %v633 = vand.u32 %v63, 4294901760
  %v634 = vsub.f32 %v63, %v633
  %635 = vmatpush.msra.mxu0 %v634
  %v636 = vand.u32 %v62, 4294901760
  %v637 = vsub.f32 %v62, %v636
  %638 = vmatpush.msra.mxu0 %v637
  %v639 = vand.u32 %v61, 4294901760
  %v640 = vsub.f32 %v61, %v639
  %641 = vmatpush.msra.mxu0 %v640
  %v642 = vand.u32 %v60, 4294901760
  %v643 = vsub.f32 %v60, %v642
  %644 = vmatpush.msra.mxu0 %v643
  %v645 = vand.u32 %v59, 4294901760
  %v646 = vsub.f32 %v59, %v645
  %647 = vmatpush.msra.mxu0 %v646
  %v648 = vand.u32 %v58, 4294901760
  %v649 = vsub.f32 %v58, %v648
  %650 = vmatpush.msra.mxu0 %v649
  %v651 = vand.u32 %v57, 4294901760
  %v652 = vsub.f32 %v57, %v651
  %653 = vmatpush.msra.mxu0 %v652
  %v654 = vand.u32 %v56, 4294901760
  %v655 = vsub.f32 %v56, %v654
  %656 = vmatpush.msra.mxu0 %v655
  %v657 = vand.u32 %v55, 4294901760
  %v658 = vsub.f32 %v55, %v657
  %659 = vmatpush.msra.mxu0 %v658
  %v660 = vand.u32 %v54, 4294901760
  %v661 = vsub.f32 %v54, %v660
  %662 = vmatpush.msra.mxu0 %v661
  %v663 = vand.u32 %v53, 4294901760
  %v664 = vsub.f32 %v53, %v663
  %665 = vmatpush.msra.mxu0 %v664
  %v666 = vand.u32 %v52, 4294901760
  %v667 = vsub.f32 %v52, %v666
  %668 = vmatpush.msra.mxu0 %v667
  %v669 = vand.u32 %v51, 4294901760
  %v670 = vsub.f32 %v51, %v669
  %671 = vmatpush.msra.mxu0 %v670
  %v672 = vand.u32 %v50, 4294901760
  %v673 = vsub.f32 %v50, %v672
  %674 = vmatpush.msra.mxu0 %v673
  %v675 = vand.u32 %v49, 4294901760
  %v676 = vsub.f32 %v49, %v675
  %677 = vmatpush.msra.mxu0 %v676
  %v678 = vand.u32 %v48, 4294901760
  %v679 = vsub.f32 %v48, %v678
  %680 = vmatpush.msra.mxu0 %v679
  %v681 = vand.u32 %v27, 4294901760
  %v682 = vsub.f32 %v27, %v681
  %683 = vmatmul.f32.gmra.mxu0 %v682
  %v684 = vpop.f32.mrf.mxu0
  %v685 = vadd.f32 %v623, %v684
  %v686 = vand.u32 %v29, 4294901760
  %v687 = vsub.f32 %v29, %v686
  %688 = vmatmul.f32.gmra.mxu0 %v687
  %v689 = vpop.f32.mrf.mxu0
  %v690 = vadd.f32 %v627, %v689
  %v691 = vand.u32 %v31, 4294901760
  %v692 = vsub.f32 %v31, %v691
  %693 = vmatmul.f32.gmra.mxu0 %v692
  %v694 = vpop.f32.mrf.mxu0
  %v695 = vadd.f32 %v631, %v694
  %696 = vdwg.mxu0
  %v697 = vand.u32 %v63, 4294901760
  %698 = vmatpush.msra.mxu0 %v697
  %v699 = vand.u32 %v62, 4294901760
  %700 = vmatpush.msra.mxu0 %v699
  %v701 = vand.u32 %v61, 4294901760
  %702 = vmatpush.msra.mxu0 %v701
  %v703 = vand.u32 %v60, 4294901760
  %704 = vmatpush.msra.mxu0 %v703
  %v705 = vand.u32 %v59, 4294901760
  %706 = vmatpush.msra.mxu0 %v705
  %v707 = vand.u32 %v58, 4294901760
  %708 = vmatpush.msra.mxu0 %v707
  %v709 = vand.u32 %v57, 4294901760
  %710 = vmatpush.msra.mxu0 %v709
  %v711 = vand.u32 %v56, 4294901760
  %712 = vmatpush.msra.mxu0 %v711
  %v713 = vand.u32 %v55, 4294901760
  %714 = vmatpush.msra.mxu0 %v713
  %v715 = vand.u32 %v54, 4294901760
  %716 = vmatpush.msra.mxu0 %v715
  %v717 = vand.u32 %v53, 4294901760
  %718 = vmatpush.msra.mxu0 %v717
  %v719 = vand.u32 %v52, 4294901760
  %720 = vmatpush.msra.mxu0 %v719
  %v721 = vand.u32 %v51, 4294901760
  %722 = vmatpush.msra.mxu0 %v721
  %v723 = vand.u32 %v50, 4294901760
  %724 = vmatpush.msra.mxu0 %v723
  %v725 = vand.u32 %v49, 4294901760
  %726 = vmatpush.msra.mxu0 %v725
  %v727 = vand.u32 %v48, 4294901760
  %728 = vmatpush.msra.mxu0 %v727
  %v729 = vand.u32 %v27, 4294901760
  %v730 = vsub.f32 %v27, %v729
  %v731 = vand.u32 %v730, 4294901760
  %732 = vmatmul.f32.gmra.mxu0 %v731
  %v733 = vpop.f32.mrf.mxu0
  %v734 = vadd.f32 %v685, %v733
  %v735 = vand.u32 %v29, 4294901760
  %v736 = vsub.f32 %v29, %v735
  %v737 = vand.u32 %v736, 4294901760
  %738 = vmatmul.f32.gmra.mxu0 %v737
  %v739 = vpop.f32.mrf.mxu0
  %v740 = vadd.f32 %v690, %v739
  %v741 = vand.u32 %v31, 4294901760
  %v742 = vsub.f32 %v31, %v741
  %v743 = vand.u32 %v742, 4294901760
  %744 = vmatmul.f32.gmra.mxu0 %v743
  %v745 = vpop.f32.mrf.mxu0
  %v746 = vadd.f32 %v695, %v745
  %747 = vdwg.mxu0
  %v748 = vand.u32 %v63, 4294901760
  %v749 = vsub.f32 %v63, %v748
  %v750 = vand.u32 %v749, 4294901760
  %751 = vmatpush.msra.mxu0 %v750
  %v752 = vand.u32 %v62, 4294901760
  %v753 = vsub.f32 %v62, %v752
  %v754 = vand.u32 %v753, 4294901760
  %755 = vmatpush.msra.mxu0 %v754
  %v756 = vand.u32 %v61, 4294901760
  %v757 = vsub.f32 %v61, %v756
  %v758 = vand.u32 %v757, 4294901760
  %759 = vmatpush.msra.mxu0 %v758
  %v760 = vand.u32 %v60, 4294901760
  %v761 = vsub.f32 %v60, %v760
  %v762 = vand.u32 %v761, 4294901760
  %763 = vmatpush.msra.mxu0 %v762
  %v764 = vand.u32 %v59, 4294901760
  %v765 = vsub.f32 %v59, %v764
  %v766 = vand.u32 %v765, 4294901760
  %767 = vmatpush.msra.mxu0 %v766
  %v768 = vand.u32 %v58, 4294901760
  %v769 = vsub.f32 %v58, %v768
  %v770 = vand.u32 %v769, 4294901760
  %771 = vmatpush.msra.mxu0 %v770
  %v772 = vand.u32 %v57, 4294901760
  %v773 = vsub.f32 %v57, %v772
  %v774 = vand.u32 %v773, 4294901760
  %775 = vmatpush.msra.mxu0 %v774
  %v776 = vand.u32 %v56, 4294901760
  %v777 = vsub.f32 %v56, %v776
  %v778 = vand.u32 %v777, 4294901760
  %779 = vmatpush.msra.mxu0 %v778
  %v780 = vand.u32 %v55, 4294901760
  %v781 = vsub.f32 %v55, %v780
  %v782 = vand.u32 %v781, 4294901760
  %783 = vmatpush.msra.mxu0 %v782
  %v784 = vand.u32 %v54, 4294901760
  %v785 = vsub.f32 %v54, %v784
  %v786 = vand.u32 %v785, 4294901760
  %787 = vmatpush.msra.mxu0 %v786
  %v788 = vand.u32 %v53, 4294901760
  %v789 = vsub.f32 %v53, %v788
  %v790 = vand.u32 %v789, 4294901760
  %791 = vmatpush.msra.mxu0 %v790
  %v792 = vand.u32 %v52, 4294901760
  %v793 = vsub.f32 %v52, %v792
  %v794 = vand.u32 %v793, 4294901760
  %795 = vmatpush.msra.mxu0 %v794
  %v796 = vand.u32 %v51, 4294901760
  %v797 = vsub.f32 %v51, %v796
  %v798 = vand.u32 %v797, 4294901760
  %799 = vmatpush.msra.mxu0 %v798
  %v800 = vand.u32 %v50, 4294901760
  %v801 = vsub.f32 %v50, %v800
  %v802 = vand.u32 %v801, 4294901760
  %803 = vmatpush.msra.mxu0 %v802
  %v804 = vand.u32 %v49, 4294901760
  %v805 = vsub.f32 %v49, %v804
  %v806 = vand.u32 %v805, 4294901760
  %807 = vmatpush.msra.mxu0 %v806
  %v808 = vand.u32 %v48, 4294901760
  %v809 = vsub.f32 %v48, %v808
  %v810 = vand.u32 %v809, 4294901760
  %811 = vmatpush.msra.mxu0 %v810
  %v812 = vand.u32 %v27, 4294901760
  %813 = vmatmul.f32.gmra.mxu0 %v812
  %v814 = vpop.f32.mrf.mxu0
  %v815 = vadd.f32 %v734, %v814
  %v816 = vand.u32 %v29, 4294901760
  %817 = vmatmul.f32.gmra.mxu0 %v816
  %v818 = vpop.f32.mrf.mxu0
  %v819 = vadd.f32 %v740, %v818
  %v820 = vand.u32 %v31, 4294901760
  %821 = vmatmul.f32.gmra.mxu0 %v820
  %v822 = vpop.f32.mrf.mxu0
  %v823 = vadd.f32 %v746, %v822
  %824 = vdwg.mxu0
  %v825 = vand.u32 %v63, 4294901760
  %826 = vmatpush.msra.mxu0 %v825
  %v827 = vand.u32 %v62, 4294901760
  %828 = vmatpush.msra.mxu0 %v827
  %v829 = vand.u32 %v61, 4294901760
  %830 = vmatpush.msra.mxu0 %v829
  %v831 = vand.u32 %v60, 4294901760
  %832 = vmatpush.msra.mxu0 %v831
  %v833 = vand.u32 %v59, 4294901760
  %834 = vmatpush.msra.mxu0 %v833
  %v835 = vand.u32 %v58, 4294901760
  %836 = vmatpush.msra.mxu0 %v835
  %v837 = vand.u32 %v57, 4294901760
  %838 = vmatpush.msra.mxu0 %v837
  %v839 = vand.u32 %v56, 4294901760
  %840 = vmatpush.msra.mxu0 %v839
  %v841 = vand.u32 %v55, 4294901760
  %842 = vmatpush.msra.mxu0 %v841
  %v843 = vand.u32 %v54, 4294901760
  %844 = vmatpush.msra.mxu0 %v843
  %v845 = vand.u32 %v53, 4294901760
  %846 = vmatpush.msra.mxu0 %v845
  %v847 = vand.u32 %v52, 4294901760
  %848 = vmatpush.msra.mxu0 %v847
  %v849 = vand.u32 %v51, 4294901760
  %850 = vmatpush.msra.mxu0 %v849
  %v851 = vand.u32 %v50, 4294901760
  %852 = vmatpush.msra.mxu0 %v851
  %v853 = vand.u32 %v49, 4294901760
  %854 = vmatpush.msra.mxu0 %v853
  %v855 = vand.u32 %v48, 4294901760
  %856 = vmatpush.msra.mxu0 %v855
  %v857 = vand.u32 %v27, 4294901760
  %858 = vmatmul.f32.gmra.mxu0 %v857
  %v859 = vpop.f32.mrf.mxu0
  %v860 = vadd.f32 %v815, %v859
  %v861 = vand.u32 %v29, 4294901760
  %862 = vmatmul.f32.gmra.mxu0 %v861
  %v863 = vpop.f32.mrf.mxu0
  %v864 = vadd.f32 %v819, %v863
  %v865 = vand.u32 %v31, 4294901760
  %866 = vmatmul.f32.gmra.mxu0 %v865
  %v867 = vpop.f32.mrf.mxu0
  %v868 = vadd.f32 %v823, %v867
  %869 = vdwg.mxu0
  %v870 = vld [vmem:[%s2] sm:$0xff]
  %v871 = vld [vmem:[%s2 + $0x8] sm:$0xff]
  %v872 = vld [vmem:[%s2 + $0x10] sm:$0xff]
  %v873 = vld [vmem:[%s2 + $0x18] sm:$0xff]
  %v874 = vld [vmem:[%s2 + $0x20] sm:$0xff]
  %v875 = vld [vmem:[%s2 + $0x28] sm:$0xff]
  %v876 = vld [vmem:[%s2 + $0x30] sm:$0xff]
  %v877 = vld [vmem:[%s2 + $0x38] sm:$0xff]
  %v878 = vld [vmem:[%s2 + $0x40] sm:$0xff]
  %v879 = vld [vmem:[%s2 + $0x48] sm:$0xff]
  %v880 = vld [vmem:[%s2 + $0x50] sm:$0xff]
  %v881 = vld [vmem:[%s2 + $0x58] sm:$0xff]
  %v882 = vld [vmem:[%s2 + $0x60] sm:$0xff]
  %v883 = vld [vmem:[%s2 + $0x68] sm:$0xff]
  %v884 = vld [vmem:[%s2 + $0x70] sm:$0xff]
  %v885 = vld [vmem:[%s2 + $0x78] sm:$0xff]
  %v886 = vld [vmem:[%s2 + $0x80] sm:$0xff]
  %v887 = vld [vmem:[%s2 + $0x88] sm:$0xff]
  %v888 = vld [vmem:[%s2 + $0x90] sm:$0xff]
  %v889 = vld [vmem:[%s2 + $0x98] sm:$0xff]
  %v890 = vld [vmem:[%s2 + $0xa0] sm:$0xff]
  %v891 = vld [vmem:[%s2 + $0xa8] sm:$0xff]
  %v892 = vld [vmem:[%s2 + $0xb0] sm:$0xff]
  %v893 = vld [vmem:[%s2 + $0xb8] sm:$0xff]
  %v894 = vld [vmem:[%s2 + $0xc0] sm:$0xff]
  %v895 = vld [vmem:[%s2 + $0xc8] sm:$0xff]
  %v896 = vld [vmem:[%s2 + $0xd0] sm:$0xff]
  %v897 = vld [vmem:[%s2 + $0xd8] sm:$0xff]
  %v898 = vld [vmem:[%s2 + $0xe0] sm:$0xff]
  %v899 = vld [vmem:[%s2 + $0xe8] sm:$0xff]
  %v900 = vld [vmem:[%s2 + $0xf0] sm:$0xff]
  %v901 = vld [vmem:[%s2 + $0xf8] sm:$0xff]
  %v902 = vand.u32 %v885, 4294901760
  %903 = vmatpush.msra.mxu0 %v902
  %v904 = vand.u32 %v884, 4294901760
  %905 = vmatpush.msra.mxu0 %v904
  %v906 = vand.u32 %v883, 4294901760
  %907 = vmatpush.msra.mxu0 %v906
  %v908 = vand.u32 %v882, 4294901760
  %909 = vmatpush.msra.mxu0 %v908
  %v910 = vand.u32 %v881, 4294901760
  %911 = vmatpush.msra.mxu0 %v910
  %v912 = vand.u32 %v880, 4294901760
  %913 = vmatpush.msra.mxu0 %v912
  %v914 = vand.u32 %v879, 4294901760
  %915 = vmatpush.msra.mxu0 %v914
  %v916 = vand.u32 %v878, 4294901760
  %917 = vmatpush.msra.mxu0 %v916
  %v918 = vand.u32 %v877, 4294901760
  %919 = vmatpush.msra.mxu0 %v918
  %v920 = vand.u32 %v876, 4294901760
  %921 = vmatpush.msra.mxu0 %v920
  %v922 = vand.u32 %v875, 4294901760
  %923 = vmatpush.msra.mxu0 %v922
  %v924 = vand.u32 %v874, 4294901760
  %925 = vmatpush.msra.mxu0 %v924
  %v926 = vand.u32 %v873, 4294901760
  %927 = vmatpush.msra.mxu0 %v926
  %v928 = vand.u32 %v872, 4294901760
  %929 = vmatpush.msra.mxu0 %v928
  %v930 = vand.u32 %v871, 4294901760
  %931 = vmatpush.msra.mxu0 %v930
  %v932 = vand.u32 %v870, 4294901760
  %933 = vmatpush.msra.mxu0 %v932
  %v934 = vand.u32 %v20, 4294901760
  %v935 = vsub.f32 %v20, %v934
  %v936 = vand.u32 %v935, 4294901760
  %v937 = vsub.f32 %v935, %v936
  %v938 = vand.u32 %v937, 4294901760
  %939 = vmatmul.f32.gmra.mxu0 %v938
  %v940 = vpop.f32.mrf.mxu0
  %v941 = vadd.f32 0.0, %v940
  %v942 = vand.u32 %v22, 4294901760
  %v943 = vsub.f32 %v22, %v942
  %v944 = vand.u32 %v943, 4294901760
  %v945 = vsub.f32 %v943, %v944
  %v946 = vand.u32 %v945, 4294901760
  %947 = vmatmul.f32.gmra.mxu0 %v946
  %v948 = vpop.f32.mrf.mxu0
  %v949 = vadd.f32 0.0, %v948
  %v950 = vand.u32 %v24, 4294901760
  %v951 = vsub.f32 %v24, %v950
  %v952 = vand.u32 %v951, 4294901760
  %v953 = vsub.f32 %v951, %v952
  %v954 = vand.u32 %v953, 4294901760
  %955 = vmatmul.f32.gmra.mxu0 %v954
  %v956 = vpop.f32.mrf.mxu0
  %v957 = vadd.f32 0.0, %v956
  %958 = vdwg.mxu0
  %v959 = vand.u32 %v885, 4294901760
  %v960 = vsub.f32 %v885, %v959
  %v961 = vand.u32 %v960, 4294901760
  %v962 = vsub.f32 %v960, %v961
  %v963 = vand.u32 %v962, 4294901760
  %964 = vmatpush.msra.mxu0 %v963
  %v965 = vand.u32 %v884, 4294901760
  %v966 = vsub.f32 %v884, %v965
  %v967 = vand.u32 %v966, 4294901760
  %v968 = vsub.f32 %v966, %v967
  %v969 = vand.u32 %v968, 4294901760
  %970 = vmatpush.msra.mxu0 %v969
  %v971 = vand.u32 %v883, 4294901760
  %v972 = vsub.f32 %v883, %v971
  %v973 = vand.u32 %v972, 4294901760
  %v974 = vsub.f32 %v972, %v973
  %v975 = vand.u32 %v974, 4294901760
  %976 = vmatpush.msra.mxu0 %v975
  %v977 = vand.u32 %v882, 4294901760
  %v978 = vsub.f32 %v882, %v977
  %v979 = vand.u32 %v978, 4294901760
  %v980 = vsub.f32 %v978, %v979
  %v981 = vand.u32 %v980, 4294901760
  %982 = vmatpush.msra.mxu0 %v981
  %v983 = vand.u32 %v881, 4294901760
  %v984 = vsub.f32 %v881, %v983
  %v985 = vand.u32 %v984, 4294901760
  %v986 = vsub.f32 %v984, %v985
  %v987 = vand.u32 %v986, 4294901760
  %988 = vmatpush.msra.mxu0 %v987
  %v989 = vand.u32 %v880, 4294901760
  %v990 = vsub.f32 %v880, %v989
  %v991 = vand.u32 %v990, 4294901760
  %v992 = vsub.f32 %v990, %v991
  %v993 = vand.u32 %v992, 4294901760
  %994 = vmatpush.msra.mxu0 %v993
  %v995 = vand.u32 %v879, 4294901760
  %v996 = vsub.f32 %v879, %v995
  %v997 = vand.u32 %v996, 4294901760
  %v998 = vsub.f32 %v996, %v997
  %v999 = vand.u32 %v998, 4294901760
  %1000 = vmatpush.msra.mxu0 %v999
  %v1001 = vand.u32 %v878, 4294901760
  %v1002 = vsub.f32 %v878, %v1001
  %v1003 = vand.u32 %v1002, 4294901760
  %v1004 = vsub.f32 %v1002, %v1003
  %v1005 = vand.u32 %v1004, 4294901760
  %1006 = vmatpush.msra.mxu0 %v1005
  %v1007 = vand.u32 %v877, 4294901760
  %v1008 = vsub.f32 %v877, %v1007
  %v1009 = vand.u32 %v1008, 4294901760
  %v1010 = vsub.f32 %v1008, %v1009
  %v1011 = vand.u32 %v1010, 4294901760
  %1012 = vmatpush.msra.mxu0 %v1011
  %v1013 = vand.u32 %v876, 4294901760
  %v1014 = vsub.f32 %v876, %v1013
  %v1015 = vand.u32 %v1014, 4294901760
  %v1016 = vsub.f32 %v1014, %v1015
  %v1017 = vand.u32 %v1016, 4294901760
  %1018 = vmatpush.msra.mxu0 %v1017
  %v1019 = vand.u32 %v875, 4294901760
  %v1020 = vsub.f32 %v875, %v1019
  %v1021 = vand.u32 %v1020, 4294901760
  %v1022 = vsub.f32 %v1020, %v1021
  %v1023 = vand.u32 %v1022, 4294901760
  %1024 = vmatpush.msra.mxu0 %v1023
  %v1025 = vand.u32 %v874, 4294901760
  %v1026 = vsub.f32 %v874, %v1025
  %v1027 = vand.u32 %v1026, 4294901760
  %v1028 = vsub.f32 %v1026, %v1027
  %v1029 = vand.u32 %v1028, 4294901760
  %1030 = vmatpush.msra.mxu0 %v1029
  %v1031 = vand.u32 %v873, 4294901760
  %v1032 = vsub.f32 %v873, %v1031
  %v1033 = vand.u32 %v1032, 4294901760
  %v1034 = vsub.f32 %v1032, %v1033
  %v1035 = vand.u32 %v1034, 4294901760
  %1036 = vmatpush.msra.mxu0 %v1035
  %v1037 = vand.u32 %v872, 4294901760
  %v1038 = vsub.f32 %v872, %v1037
  %v1039 = vand.u32 %v1038, 4294901760
  %v1040 = vsub.f32 %v1038, %v1039
  %v1041 = vand.u32 %v1040, 4294901760
  %1042 = vmatpush.msra.mxu0 %v1041
  %v1043 = vand.u32 %v871, 4294901760
  %v1044 = vsub.f32 %v871, %v1043
  %v1045 = vand.u32 %v1044, 4294901760
  %v1046 = vsub.f32 %v1044, %v1045
  %v1047 = vand.u32 %v1046, 4294901760
  %1048 = vmatpush.msra.mxu0 %v1047
  %v1049 = vand.u32 %v870, 4294901760
  %v1050 = vsub.f32 %v870, %v1049
  %v1051 = vand.u32 %v1050, 4294901760
  %v1052 = vsub.f32 %v1050, %v1051
  %v1053 = vand.u32 %v1052, 4294901760
  %1054 = vmatpush.msra.mxu0 %v1053
  %v1055 = vand.u32 %v20, 4294901760
  %1056 = vmatmul.f32.gmra.mxu0 %v1055
  %v1057 = vpop.f32.mrf.mxu0
  %v1058 = vadd.f32 %v941, %v1057
  %v1059 = vand.u32 %v22, 4294901760
  %1060 = vmatmul.f32.gmra.mxu0 %v1059
  %v1061 = vpop.f32.mrf.mxu0
  %v1062 = vadd.f32 %v949, %v1061
  %v1063 = vand.u32 %v24, 4294901760
  %1064 = vmatmul.f32.gmra.mxu0 %v1063
  %v1065 = vpop.f32.mrf.mxu0
  %v1066 = vadd.f32 %v957, %v1065
  %1067 = vdwg.mxu0
  %v1068 = vand.u32 %v885, 4294901760
  %v1069 = vsub.f32 %v885, %v1068
  %1070 = vmatpush.msra.mxu0 %v1069
  %v1071 = vand.u32 %v884, 4294901760
  %v1072 = vsub.f32 %v884, %v1071
  %1073 = vmatpush.msra.mxu0 %v1072
  %v1074 = vand.u32 %v883, 4294901760
  %v1075 = vsub.f32 %v883, %v1074
  %1076 = vmatpush.msra.mxu0 %v1075
  %v1077 = vand.u32 %v882, 4294901760
  %v1078 = vsub.f32 %v882, %v1077
  %1079 = vmatpush.msra.mxu0 %v1078
  %v1080 = vand.u32 %v881, 4294901760
  %v1081 = vsub.f32 %v881, %v1080
  %1082 = vmatpush.msra.mxu0 %v1081
  %v1083 = vand.u32 %v880, 4294901760
  %v1084 = vsub.f32 %v880, %v1083
  %1085 = vmatpush.msra.mxu0 %v1084
  %v1086 = vand.u32 %v879, 4294901760
  %v1087 = vsub.f32 %v879, %v1086
  %1088 = vmatpush.msra.mxu0 %v1087
  %v1089 = vand.u32 %v878, 4294901760
  %v1090 = vsub.f32 %v878, %v1089
  %1091 = vmatpush.msra.mxu0 %v1090
  %v1092 = vand.u32 %v877, 4294901760
  %v1093 = vsub.f32 %v877, %v1092
  %1094 = vmatpush.msra.mxu0 %v1093
  %v1095 = vand.u32 %v876, 4294901760
  %v1096 = vsub.f32 %v876, %v1095
  %1097 = vmatpush.msra.mxu0 %v1096
  %v1098 = vand.u32 %v875, 4294901760
  %v1099 = vsub.f32 %v875, %v1098
  %1100 = vmatpush.msra.mxu0 %v1099
  %v1101 = vand.u32 %v874, 4294901760
  %v1102 = vsub.f32 %v874, %v1101
  %1103 = vmatpush.msra.mxu0 %v1102
  %v1104 = vand.u32 %v873, 4294901760
  %v1105 = vsub.f32 %v873, %v1104
  %1106 = vmatpush.msra.mxu0 %v1105
  %v1107 = vand.u32 %v872, 4294901760
  %v1108 = vsub.f32 %v872, %v1107
  %1109 = vmatpush.msra.mxu0 %v1108
  %v1110 = vand.u32 %v871, 4294901760
  %v1111 = vsub.f32 %v871, %v1110
  %1112 = vmatpush.msra.mxu0 %v1111
  %v1113 = vand.u32 %v870, 4294901760
  %v1114 = vsub.f32 %v870, %v1113
  %1115 = vmatpush.msra.mxu0 %v1114
  %v1116 = vand.u32 %v20, 4294901760
  %v1117 = vsub.f32 %v20, %v1116
  %1118 = vmatmul.f32.gmra.mxu0 %v1117
  %v1119 = vpop.f32.mrf.mxu0
  %v1120 = vadd.f32 %v1058, %v1119
  %v1121 = vand.u32 %v22, 4294901760
  %v1122 = vsub.f32 %v22, %v1121
  %1123 = vmatmul.f32.gmra.mxu0 %v1122
  %v1124 = vpop.f32.mrf.mxu0
  %v1125 = vadd.f32 %v1062, %v1124
  %v1126 = vand.u32 %v24, 4294901760
  %v1127 = vsub.f32 %v24, %v1126
  %1128 = vmatmul.f32.gmra.mxu0 %v1127
  %v1129 = vpop.f32.mrf.mxu0
  %v1130 = vadd.f32 %v1066, %v1129
  %1131 = vdwg.mxu0
  %v1132 = vand.u32 %v885, 4294901760
  %1133 = vmatpush.msra.mxu0 %v1132
  %v1134 = vand.u32 %v884, 4294901760
  %1135 = vmatpush.msra.mxu0 %v1134
  %v1136 = vand.u32 %v883, 4294901760
  %1137 = vmatpush.msra.mxu0 %v1136
  %v1138 = vand.u32 %v882, 4294901760
  %1139 = vmatpush.msra.mxu0 %v1138
  %v1140 = vand.u32 %v881, 4294901760
  %1141 = vmatpush.msra.mxu0 %v1140
  %v1142 = vand.u32 %v880, 4294901760
  %1143 = vmatpush.msra.mxu0 %v1142
  %v1144 = vand.u32 %v879, 4294901760
  %1145 = vmatpush.msra.mxu0 %v1144
  %v1146 = vand.u32 %v878, 4294901760
  %1147 = vmatpush.msra.mxu0 %v1146
  %v1148 = vand.u32 %v877, 4294901760
  %1149 = vmatpush.msra.mxu0 %v1148
  %v1150 = vand.u32 %v876, 4294901760
  %1151 = vmatpush.msra.mxu0 %v1150
  %v1152 = vand.u32 %v875, 4294901760
  %1153 = vmatpush.msra.mxu0 %v1152
  %v1154 = vand.u32 %v874, 4294901760
  %1155 = vmatpush.msra.mxu0 %v1154
  %v1156 = vand.u32 %v873, 4294901760
  %1157 = vmatpush.msra.mxu0 %v1156
  %v1158 = vand.u32 %v872, 4294901760
  %1159 = vmatpush.msra.mxu0 %v1158
  %v1160 = vand.u32 %v871, 4294901760
  %1161 = vmatpush.msra.mxu0 %v1160
  %v1162 = vand.u32 %v870, 4294901760
  %1163 = vmatpush.msra.mxu0 %v1162
  %v1164 = vand.u32 %v20, 4294901760
  %v1165 = vsub.f32 %v20, %v1164
  %v1166 = vand.u32 %v1165, 4294901760
  %1167 = vmatmul.f32.gmra.mxu0 %v1166
  %v1168 = vpop.f32.mrf.mxu0
  %v1169 = vadd.f32 %v1120, %v1168
  %v1170 = vand.u32 %v22, 4294901760
  %v1171 = vsub.f32 %v22, %v1170
  %v1172 = vand.u32 %v1171, 4294901760
  %1173 = vmatmul.f32.gmra.mxu0 %v1172
  %v1174 = vpop.f32.mrf.mxu0
  %v1175 = vadd.f32 %v1125, %v1174
  %v1176 = vand.u32 %v24, 4294901760
  %v1177 = vsub.f32 %v24, %v1176
  %v1178 = vand.u32 %v1177, 4294901760
  %1179 = vmatmul.f32.gmra.mxu0 %v1178
  %v1180 = vpop.f32.mrf.mxu0
  %v1181 = vadd.f32 %v1130, %v1180
  %1182 = vdwg.mxu0
  %v1183 = vand.u32 %v885, 4294901760
  %v1184 = vsub.f32 %v885, %v1183
  %v1185 = vand.u32 %v1184, 4294901760
  %1186 = vmatpush.msra.mxu0 %v1185
  %v1187 = vand.u32 %v884, 4294901760
  %v1188 = vsub.f32 %v884, %v1187
  %v1189 = vand.u32 %v1188, 4294901760
  %1190 = vmatpush.msra.mxu0 %v1189
  %v1191 = vand.u32 %v883, 4294901760
  %v1192 = vsub.f32 %v883, %v1191
  %v1193 = vand.u32 %v1192, 4294901760
  %1194 = vmatpush.msra.mxu0 %v1193
  %v1195 = vand.u32 %v882, 4294901760
  %v1196 = vsub.f32 %v882, %v1195
  %v1197 = vand.u32 %v1196, 4294901760
  %1198 = vmatpush.msra.mxu0 %v1197
  %v1199 = vand.u32 %v881, 4294901760
  %v1200 = vsub.f32 %v881, %v1199
  %v1201 = vand.u32 %v1200, 4294901760
  %1202 = vmatpush.msra.mxu0 %v1201
  %v1203 = vand.u32 %v880, 4294901760
  %v1204 = vsub.f32 %v880, %v1203
  %v1205 = vand.u32 %v1204, 4294901760
  %1206 = vmatpush.msra.mxu0 %v1205
  %v1207 = vand.u32 %v879, 4294901760
  %v1208 = vsub.f32 %v879, %v1207
  %v1209 = vand.u32 %v1208, 4294901760
  %1210 = vmatpush.msra.mxu0 %v1209
  %v1211 = vand.u32 %v878, 4294901760
  %v1212 = vsub.f32 %v878, %v1211
  %v1213 = vand.u32 %v1212, 4294901760
  %1214 = vmatpush.msra.mxu0 %v1213
  %v1215 = vand.u32 %v877, 4294901760
  %v1216 = vsub.f32 %v877, %v1215
  %v1217 = vand.u32 %v1216, 4294901760
  %1218 = vmatpush.msra.mxu0 %v1217
  %v1219 = vand.u32 %v876, 4294901760
  %v1220 = vsub.f32 %v876, %v1219
  %v1221 = vand.u32 %v1220, 4294901760
  %1222 = vmatpush.msra.mxu0 %v1221
  %v1223 = vand.u32 %v875, 4294901760
  %v1224 = vsub.f32 %v875, %v1223
  %v1225 = vand.u32 %v1224, 4294901760
  %1226 = vmatpush.msra.mxu0 %v1225
  %v1227 = vand.u32 %v874, 4294901760
  %v1228 = vsub.f32 %v874, %v1227
  %v1229 = vand.u32 %v1228, 4294901760
  %1230 = vmatpush.msra.mxu0 %v1229
  %v1231 = vand.u32 %v873, 4294901760
  %v1232 = vsub.f32 %v873, %v1231
  %v1233 = vand.u32 %v1232, 4294901760
  %1234 = vmatpush.msra.mxu0 %v1233
  %v1235 = vand.u32 %v872, 4294901760
  %v1236 = vsub.f32 %v872, %v1235
  %v1237 = vand.u32 %v1236, 4294901760
  %1238 = vmatpush.msra.mxu0 %v1237
  %v1239 = vand.u32 %v871, 4294901760
  %v1240 = vsub.f32 %v871, %v1239
  %v1241 = vand.u32 %v1240, 4294901760
  %1242 = vmatpush.msra.mxu0 %v1241
  %v1243 = vand.u32 %v870, 4294901760
  %v1244 = vsub.f32 %v870, %v1243
  %v1245 = vand.u32 %v1244, 4294901760
  %1246 = vmatpush.msra.mxu0 %v1245
  %v1247 = vand.u32 %v20, 4294901760
  %1248 = vmatmul.f32.gmra.mxu0 %v1247
  %v1249 = vpop.f32.mrf.mxu0
  %v1250 = vadd.f32 %v1169, %v1249
  %v1251 = vand.u32 %v22, 4294901760
  %1252 = vmatmul.f32.gmra.mxu0 %v1251
  %v1253 = vpop.f32.mrf.mxu0
  %v1254 = vadd.f32 %v1175, %v1253
  %v1255 = vand.u32 %v24, 4294901760
  %1256 = vmatmul.f32.gmra.mxu0 %v1255
  %v1257 = vpop.f32.mrf.mxu0
  %v1258 = vadd.f32 %v1181, %v1257
  %1259 = vdwg.mxu0
  %v1260 = vand.u32 %v885, 4294901760
  %1261 = vmatpush.msra.mxu0 %v1260
  %v1262 = vand.u32 %v884, 4294901760
  %1263 = vmatpush.msra.mxu0 %v1262
  %v1264 = vand.u32 %v883, 4294901760
  %1265 = vmatpush.msra.mxu0 %v1264
  %v1266 = vand.u32 %v882, 4294901760
  %1267 = vmatpush.msra.mxu0 %v1266
  %v1268 = vand.u32 %v881, 4294901760
  %1269 = vmatpush.msra.mxu0 %v1268
  %v1270 = vand.u32 %v880, 4294901760
  %1271 = vmatpush.msra.mxu0 %v1270
  %v1272 = vand.u32 %v879, 4294901760
  %1273 = vmatpush.msra.mxu0 %v1272
  %v1274 = vand.u32 %v878, 4294901760
  %1275 = vmatpush.msra.mxu0 %v1274
  %v1276 = vand.u32 %v877, 4294901760
  %1277 = vmatpush.msra.mxu0 %v1276
  %v1278 = vand.u32 %v876, 4294901760
  %1279 = vmatpush.msra.mxu0 %v1278
  %v1280 = vand.u32 %v875, 4294901760
  %1281 = vmatpush.msra.mxu0 %v1280
  %v1282 = vand.u32 %v874, 4294901760
  %1283 = vmatpush.msra.mxu0 %v1282
  %v1284 = vand.u32 %v873, 4294901760
  %1285 = vmatpush.msra.mxu0 %v1284
  %v1286 = vand.u32 %v872, 4294901760
  %1287 = vmatpush.msra.mxu0 %v1286
  %v1288 = vand.u32 %v871, 4294901760
  %1289 = vmatpush.msra.mxu0 %v1288
  %v1290 = vand.u32 %v870, 4294901760
  %1291 = vmatpush.msra.mxu0 %v1290
  %v1292 = vand.u32 %v20, 4294901760
  %1293 = vmatmul.f32.gmra.mxu0 %v1292
  %v1294 = vpop.f32.mrf.mxu0
  %v1295 = vadd.f32 %v1250, %v1294
  %v1296 = vand.u32 %v22, 4294901760
  %1297 = vmatmul.f32.gmra.mxu0 %v1296
  %v1298 = vpop.f32.mrf.mxu0
  %v1299 = vadd.f32 %v1254, %v1298
  %v1300 = vand.u32 %v24, 4294901760
  %1301 = vmatmul.f32.gmra.mxu0 %v1300
  %v1302 = vpop.f32.mrf.mxu0
  %v1303 = vadd.f32 %v1258, %v1302
  %1304 = vdwg.mxu0
  %v1305 = vand.u32 %v901, 4294901760
  %1306 = vmatpush.msra.mxu0 %v1305
  %v1307 = vand.u32 %v900, 4294901760
  %1308 = vmatpush.msra.mxu0 %v1307
  %v1309 = vand.u32 %v899, 4294901760
  %1310 = vmatpush.msra.mxu0 %v1309
  %v1311 = vand.u32 %v898, 4294901760
  %1312 = vmatpush.msra.mxu0 %v1311
  %v1313 = vand.u32 %v897, 4294901760
  %1314 = vmatpush.msra.mxu0 %v1313
  %v1315 = vand.u32 %v896, 4294901760
  %1316 = vmatpush.msra.mxu0 %v1315
  %v1317 = vand.u32 %v895, 4294901760
  %1318 = vmatpush.msra.mxu0 %v1317
  %v1319 = vand.u32 %v894, 4294901760
  %1320 = vmatpush.msra.mxu0 %v1319
  %v1321 = vand.u32 %v893, 4294901760
  %1322 = vmatpush.msra.mxu0 %v1321
  %v1323 = vand.u32 %v892, 4294901760
  %1324 = vmatpush.msra.mxu0 %v1323
  %v1325 = vand.u32 %v891, 4294901760
  %1326 = vmatpush.msra.mxu0 %v1325
  %v1327 = vand.u32 %v890, 4294901760
  %1328 = vmatpush.msra.mxu0 %v1327
  %v1329 = vand.u32 %v889, 4294901760
  %1330 = vmatpush.msra.mxu0 %v1329
  %v1331 = vand.u32 %v888, 4294901760
  %1332 = vmatpush.msra.mxu0 %v1331
  %v1333 = vand.u32 %v887, 4294901760
  %1334 = vmatpush.msra.mxu0 %v1333
  %v1335 = vand.u32 %v886, 4294901760
  %1336 = vmatpush.msra.mxu0 %v1335
  %v1337 = vand.u32 %v21, 4294901760
  %v1338 = vsub.f32 %v21, %v1337
  %v1339 = vand.u32 %v1338, 4294901760
  %v1340 = vsub.f32 %v1338, %v1339
  %v1341 = vand.u32 %v1340, 4294901760
  %1342 = vmatmul.f32.gmra.mxu0 %v1341
  %v1343 = vpop.f32.mrf.mxu0
  %v1344 = vadd.f32 %v1295, %v1343
  %v1345 = vand.u32 %v23, 4294901760
  %v1346 = vsub.f32 %v23, %v1345
  %v1347 = vand.u32 %v1346, 4294901760
  %v1348 = vsub.f32 %v1346, %v1347
  %v1349 = vand.u32 %v1348, 4294901760
  %1350 = vmatmul.f32.gmra.mxu0 %v1349
  %v1351 = vpop.f32.mrf.mxu0
  %v1352 = vadd.f32 %v1299, %v1351
  %v1353 = vand.u32 %v25, 4294901760
  %v1354 = vsub.f32 %v25, %v1353
  %v1355 = vand.u32 %v1354, 4294901760
  %v1356 = vsub.f32 %v1354, %v1355
  %v1357 = vand.u32 %v1356, 4294901760
  %1358 = vmatmul.f32.gmra.mxu0 %v1357
  %v1359 = vpop.f32.mrf.mxu0
  %v1360 = vadd.f32 %v1303, %v1359
  %1361 = vdwg.mxu0
  %v1362 = vand.u32 %v901, 4294901760
  %v1363 = vsub.f32 %v901, %v1362
  %v1364 = vand.u32 %v1363, 4294901760
  %v1365 = vsub.f32 %v1363, %v1364
  %v1366 = vand.u32 %v1365, 4294901760
  %1367 = vmatpush.msra.mxu0 %v1366
  %v1368 = vand.u32 %v900, 4294901760
  %v1369 = vsub.f32 %v900, %v1368
  %v1370 = vand.u32 %v1369, 4294901760
  %v1371 = vsub.f32 %v1369, %v1370
  %v1372 = vand.u32 %v1371, 4294901760
  %1373 = vmatpush.msra.mxu0 %v1372
  %v1374 = vand.u32 %v899, 4294901760
  %v1375 = vsub.f32 %v899, %v1374
  %v1376 = vand.u32 %v1375, 4294901760
  %v1377 = vsub.f32 %v1375, %v1376
  %v1378 = vand.u32 %v1377, 4294901760
  %1379 = vmatpush.msra.mxu0 %v1378
  %v1380 = vand.u32 %v898, 4294901760
  %v1381 = vsub.f32 %v898, %v1380
  %v1382 = vand.u32 %v1381, 4294901760
  %v1383 = vsub.f32 %v1381, %v1382
  %v1384 = vand.u32 %v1383, 4294901760
  %1385 = vmatpush.msra.mxu0 %v1384
  %v1386 = vand.u32 %v897, 4294901760
  %v1387 = vsub.f32 %v897, %v1386
  %v1388 = vand.u32 %v1387, 4294901760
  %v1389 = vsub.f32 %v1387, %v1388
  %v1390 = vand.u32 %v1389, 4294901760
  %1391 = vmatpush.msra.mxu0 %v1390
  %v1392 = vand.u32 %v896, 4294901760
  %v1393 = vsub.f32 %v896, %v1392
  %v1394 = vand.u32 %v1393, 4294901760
  %v1395 = vsub.f32 %v1393, %v1394
  %v1396 = vand.u32 %v1395, 4294901760
  %1397 = vmatpush.msra.mxu0 %v1396
  %v1398 = vand.u32 %v895, 4294901760
  %v1399 = vsub.f32 %v895, %v1398
  %v1400 = vand.u32 %v1399, 4294901760
  %v1401 = vsub.f32 %v1399, %v1400
  %v1402 = vand.u32 %v1401, 4294901760
  %1403 = vmatpush.msra.mxu0 %v1402
  %v1404 = vand.u32 %v894, 4294901760
  %v1405 = vsub.f32 %v894, %v1404
  %v1406 = vand.u32 %v1405, 4294901760
  %v1407 = vsub.f32 %v1405, %v1406
  %v1408 = vand.u32 %v1407, 4294901760
  %1409 = vmatpush.msra.mxu0 %v1408
  %v1410 = vand.u32 %v893, 4294901760
  %v1411 = vsub.f32 %v893, %v1410
  %v1412 = vand.u32 %v1411, 4294901760
  %v1413 = vsub.f32 %v1411, %v1412
  %v1414 = vand.u32 %v1413, 4294901760
  %1415 = vmatpush.msra.mxu0 %v1414
  %v1416 = vand.u32 %v892, 4294901760
  %v1417 = vsub.f32 %v892, %v1416
  %v1418 = vand.u32 %v1417, 4294901760
  %v1419 = vsub.f32 %v1417, %v1418
  %v1420 = vand.u32 %v1419, 4294901760
  %1421 = vmatpush.msra.mxu0 %v1420
  %v1422 = vand.u32 %v891, 4294901760
  %v1423 = vsub.f32 %v891, %v1422
  %v1424 = vand.u32 %v1423, 4294901760
  %v1425 = vsub.f32 %v1423, %v1424
  %v1426 = vand.u32 %v1425, 4294901760
  %1427 = vmatpush.msra.mxu0 %v1426
  %v1428 = vand.u32 %v890, 4294901760
  %v1429 = vsub.f32 %v890, %v1428
  %v1430 = vand.u32 %v1429, 4294901760
  %v1431 = vsub.f32 %v1429, %v1430
  %v1432 = vand.u32 %v1431, 4294901760
  %1433 = vmatpush.msra.mxu0 %v1432
  %v1434 = vand.u32 %v889, 4294901760
  %v1435 = vsub.f32 %v889, %v1434
  %v1436 = vand.u32 %v1435, 4294901760
  %v1437 = vsub.f32 %v1435, %v1436
  %v1438 = vand.u32 %v1437, 4294901760
  %1439 = vmatpush.msra.mxu0 %v1438
  %v1440 = vand.u32 %v888, 4294901760
  %v1441 = vsub.f32 %v888, %v1440
  %v1442 = vand.u32 %v1441, 4294901760
  %v1443 = vsub.f32 %v1441, %v1442
  %v1444 = vand.u32 %v1443, 4294901760
  %1445 = vmatpush.msra.mxu0 %v1444
  %v1446 = vand.u32 %v887, 4294901760
  %v1447 = vsub.f32 %v887, %v1446
  %v1448 = vand.u32 %v1447, 4294901760
  %v1449 = vsub.f32 %v1447, %v1448
  %v1450 = vand.u32 %v1449, 4294901760
  %1451 = vmatpush.msra.mxu0 %v1450
  %v1452 = vand.u32 %v886, 4294901760
  %v1453 = vsub.f32 %v886, %v1452
  %v1454 = vand.u32 %v1453, 4294901760
  %v1455 = vsub.f32 %v1453, %v1454
  %v1456 = vand.u32 %v1455, 4294901760
  %1457 = vmatpush.msra.mxu0 %v1456
  %v1458 = vand.u32 %v21, 4294901760
  %1459 = vmatmul.f32.gmra.mxu0 %v1458
  %v1460 = vpop.f32.mrf.mxu0
  %v1461 = vadd.f32 %v1344, %v1460
  %v1462 = vand.u32 %v23, 4294901760
  %1463 = vmatmul.f32.gmra.mxu0 %v1462
  %v1464 = vpop.f32.mrf.mxu0
  %v1465 = vadd.f32 %v1352, %v1464
  %v1466 = vand.u32 %v25, 4294901760
  %1467 = vmatmul.f32.gmra.mxu0 %v1466
  %v1468 = vpop.f32.mrf.mxu0
  %v1469 = vadd.f32 %v1360, %v1468
  %1470 = vdwg.mxu0
  %v1471 = vand.u32 %v901, 4294901760
  %v1472 = vsub.f32 %v901, %v1471
  %1473 = vmatpush.msra.mxu0 %v1472
  %v1474 = vand.u32 %v900, 4294901760
  %v1475 = vsub.f32 %v900, %v1474
  %1476 = vmatpush.msra.mxu0 %v1475
  %v1477 = vand.u32 %v899, 4294901760
  %v1478 = vsub.f32 %v899, %v1477
  %1479 = vmatpush.msra.mxu0 %v1478
  %v1480 = vand.u32 %v898, 4294901760
  %v1481 = vsub.f32 %v898, %v1480
  %1482 = vmatpush.msra.mxu0 %v1481
  %v1483 = vand.u32 %v897, 4294901760
  %v1484 = vsub.f32 %v897, %v1483
  %1485 = vmatpush.msra.mxu0 %v1484
  %v1486 = vand.u32 %v896, 4294901760
  %v1487 = vsub.f32 %v896, %v1486
  %1488 = vmatpush.msra.mxu0 %v1487
  %v1489 = vand.u32 %v895, 4294901760
  %v1490 = vsub.f32 %v895, %v1489
  %1491 = vmatpush.msra.mxu0 %v1490
  %v1492 = vand.u32 %v894, 4294901760
  %v1493 = vsub.f32 %v894, %v1492
  %1494 = vmatpush.msra.mxu0 %v1493
  %v1495 = vand.u32 %v893, 4294901760
  %v1496 = vsub.f32 %v893, %v1495
  %1497 = vmatpush.msra.mxu0 %v1496
  %v1498 = vand.u32 %v892, 4294901760
  %v1499 = vsub.f32 %v892, %v1498
  %1500 = vmatpush.msra.mxu0 %v1499
  %v1501 = vand.u32 %v891, 4294901760
  %v1502 = vsub.f32 %v891, %v1501
  %1503 = vmatpush.msra.mxu0 %v1502
  %v1504 = vand.u32 %v890, 4294901760
  %v1505 = vsub.f32 %v890, %v1504
  %1506 = vmatpush.msra.mxu0 %v1505
  %v1507 = vand.u32 %v889, 4294901760
  %v1508 = vsub.f32 %v889, %v1507
  %1509 = vmatpush.msra.mxu0 %v1508
  %v1510 = vand.u32 %v888, 4294901760
  %v1511 = vsub.f32 %v888, %v1510
  %1512 = vmatpush.msra.mxu0 %v1511
  %v1513 = vand.u32 %v887, 4294901760
  %v1514 = vsub.f32 %v887, %v1513
  %1515 = vmatpush.msra.mxu0 %v1514
  %v1516 = vand.u32 %v886, 4294901760
  %v1517 = vsub.f32 %v886, %v1516
  %1518 = vmatpush.msra.mxu0 %v1517
  %v1519 = vand.u32 %v21, 4294901760
  %v1520 = vsub.f32 %v21, %v1519
  %1521 = vmatmul.f32.gmra.mxu0 %v1520
  %v1522 = vpop.f32.mrf.mxu0
  %v1523 = vadd.f32 %v1461, %v1522
  %v1524 = vand.u32 %v23, 4294901760
  %v1525 = vsub.f32 %v23, %v1524
  %1526 = vmatmul.f32.gmra.mxu0 %v1525
  %v1527 = vpop.f32.mrf.mxu0
  %v1528 = vadd.f32 %v1465, %v1527
  %v1529 = vand.u32 %v25, 4294901760
  %v1530 = vsub.f32 %v25, %v1529
  %1531 = vmatmul.f32.gmra.mxu0 %v1530
  %v1532 = vpop.f32.mrf.mxu0
  %v1533 = vadd.f32 %v1469, %v1532
  %1534 = vdwg.mxu0
  %v1535 = vand.u32 %v901, 4294901760
  %1536 = vmatpush.msra.mxu0 %v1535
  %v1537 = vand.u32 %v900, 4294901760
  %1538 = vmatpush.msra.mxu0 %v1537
  %v1539 = vand.u32 %v899, 4294901760
  %1540 = vmatpush.msra.mxu0 %v1539
  %v1541 = vand.u32 %v898, 4294901760
  %1542 = vmatpush.msra.mxu0 %v1541
  %v1543 = vand.u32 %v897, 4294901760
  %1544 = vmatpush.msra.mxu0 %v1543
  %v1545 = vand.u32 %v896, 4294901760
  %1546 = vmatpush.msra.mxu0 %v1545
  %v1547 = vand.u32 %v895, 4294901760
  %1548 = vmatpush.msra.mxu0 %v1547
  %v1549 = vand.u32 %v894, 4294901760
  %1550 = vmatpush.msra.mxu0 %v1549
  %v1551 = vand.u32 %v893, 4294901760
  %1552 = vmatpush.msra.mxu0 %v1551
  %v1553 = vand.u32 %v892, 4294901760
  %1554 = vmatpush.msra.mxu0 %v1553
  %v1555 = vand.u32 %v891, 4294901760
  %1556 = vmatpush.msra.mxu0 %v1555
  %v1557 = vand.u32 %v890, 4294901760
  %1558 = vmatpush.msra.mxu0 %v1557
  %v1559 = vand.u32 %v889, 4294901760
  %1560 = vmatpush.msra.mxu0 %v1559
  %v1561 = vand.u32 %v888, 4294901760
  %1562 = vmatpush.msra.mxu0 %v1561
  %v1563 = vand.u32 %v887, 4294901760
  %1564 = vmatpush.msra.mxu0 %v1563
  %v1565 = vand.u32 %v886, 4294901760
  %1566 = vmatpush.msra.mxu0 %v1565
  %v1567 = vand.u32 %v21, 4294901760
  %v1568 = vsub.f32 %v21, %v1567
  %v1569 = vand.u32 %v1568, 4294901760
  %1570 = vmatmul.f32.gmra.mxu0 %v1569
  %v1571 = vpop.f32.mrf.mxu0
  %v1572 = vadd.f32 %v1523, %v1571
  %v1573 = vand.u32 %v23, 4294901760
  %v1574 = vsub.f32 %v23, %v1573
  %v1575 = vand.u32 %v1574, 4294901760
  %1576 = vmatmul.f32.gmra.mxu0 %v1575
  %v1577 = vpop.f32.mrf.mxu0
  %v1578 = vadd.f32 %v1528, %v1577
  %v1579 = vand.u32 %v25, 4294901760
  %v1580 = vsub.f32 %v25, %v1579
  %v1581 = vand.u32 %v1580, 4294901760
  %1582 = vmatmul.f32.gmra.mxu0 %v1581
  %v1583 = vpop.f32.mrf.mxu0
  %v1584 = vadd.f32 %v1533, %v1583
  %1585 = vdwg.mxu0
  %v1586 = vand.u32 %v901, 4294901760
  %v1587 = vsub.f32 %v901, %v1586
  %v1588 = vand.u32 %v1587, 4294901760
  %1589 = vmatpush.msra.mxu0 %v1588
  %v1590 = vand.u32 %v900, 4294901760
  %v1591 = vsub.f32 %v900, %v1590
  %v1592 = vand.u32 %v1591, 4294901760
  %1593 = vmatpush.msra.mxu0 %v1592
  %v1594 = vand.u32 %v899, 4294901760
  %v1595 = vsub.f32 %v899, %v1594
  %v1596 = vand.u32 %v1595, 4294901760
  %1597 = vmatpush.msra.mxu0 %v1596
  %v1598 = vand.u32 %v898, 4294901760
  %v1599 = vsub.f32 %v898, %v1598
  %v1600 = vand.u32 %v1599, 4294901760
  %1601 = vmatpush.msra.mxu0 %v1600
  %v1602 = vand.u32 %v897, 4294901760
  %v1603 = vsub.f32 %v897, %v1602
  %v1604 = vand.u32 %v1603, 4294901760
  %1605 = vmatpush.msra.mxu0 %v1604
  %v1606 = vand.u32 %v896, 4294901760
  %v1607 = vsub.f32 %v896, %v1606
  %v1608 = vand.u32 %v1607, 4294901760
  %1609 = vmatpush.msra.mxu0 %v1608
  %v1610 = vand.u32 %v895, 4294901760
  %v1611 = vsub.f32 %v895, %v1610
  %v1612 = vand.u32 %v1611, 4294901760
  %1613 = vmatpush.msra.mxu0 %v1612
  %v1614 = vand.u32 %v894, 4294901760
  %v1615 = vsub.f32 %v894, %v1614
  %v1616 = vand.u32 %v1615, 4294901760
  %1617 = vmatpush.msra.mxu0 %v1616
  %v1618 = vand.u32 %v893, 4294901760
  %v1619 = vsub.f32 %v893, %v1618
  %v1620 = vand.u32 %v1619, 4294901760
  %1621 = vmatpush.msra.mxu0 %v1620
  %v1622 = vand.u32 %v892, 4294901760
  %v1623 = vsub.f32 %v892, %v1622
  %v1624 = vand.u32 %v1623, 4294901760
  %1625 = vmatpush.msra.mxu0 %v1624
  %v1626 = vand.u32 %v891, 4294901760
  %v1627 = vsub.f32 %v891, %v1626
  %v1628 = vand.u32 %v1627, 4294901760
  %1629 = vmatpush.msra.mxu0 %v1628
  %v1630 = vand.u32 %v890, 4294901760
  %v1631 = vsub.f32 %v890, %v1630
  %v1632 = vand.u32 %v1631, 4294901760
  %1633 = vmatpush.msra.mxu0 %v1632
  %v1634 = vand.u32 %v889, 4294901760
  %v1635 = vsub.f32 %v889, %v1634
  %v1636 = vand.u32 %v1635, 4294901760
  %1637 = vmatpush.msra.mxu0 %v1636
  %v1638 = vand.u32 %v888, 4294901760
  %v1639 = vsub.f32 %v888, %v1638
  %v1640 = vand.u32 %v1639, 4294901760
  %1641 = vmatpush.msra.mxu0 %v1640
  %v1642 = vand.u32 %v887, 4294901760
  %v1643 = vsub.f32 %v887, %v1642
  %v1644 = vand.u32 %v1643, 4294901760
  %1645 = vmatpush.msra.mxu0 %v1644
  %v1646 = vand.u32 %v886, 4294901760
  %v1647 = vsub.f32 %v886, %v1646
  %v1648 = vand.u32 %v1647, 4294901760
  %1649 = vmatpush.msra.mxu0 %v1648
  %v1650 = vand.u32 %v21, 4294901760
  %1651 = vmatmul.f32.gmra.mxu0 %v1650
  %v1652 = vpop.f32.mrf.mxu0
  %v1653 = vadd.f32 %v1572, %v1652
  %v1654 = vand.u32 %v23, 4294901760
  %1655 = vmatmul.f32.gmra.mxu0 %v1654
  %v1656 = vpop.f32.mrf.mxu0
  %v1657 = vadd.f32 %v1578, %v1656
  %v1658 = vand.u32 %v25, 4294901760
  %1659 = vmatmul.f32.gmra.mxu0 %v1658
  %v1660 = vpop.f32.mrf.mxu0
  %v1661 = vadd.f32 %v1584, %v1660
  %1662 = vdwg.mxu0
  %v1663 = vand.u32 %v901, 4294901760
  %1664 = vmatpush.msra.mxu0 %v1663
  %v1665 = vand.u32 %v900, 4294901760
  %1666 = vmatpush.msra.mxu0 %v1665
  %v1667 = vand.u32 %v899, 4294901760
  %1668 = vmatpush.msra.mxu0 %v1667
  %v1669 = vand.u32 %v898, 4294901760
  %1670 = vmatpush.msra.mxu0 %v1669
  %v1671 = vand.u32 %v897, 4294901760
  %1672 = vmatpush.msra.mxu0 %v1671
  %v1673 = vand.u32 %v896, 4294901760
  %1674 = vmatpush.msra.mxu0 %v1673
  %v1675 = vand.u32 %v895, 4294901760
  %1676 = vmatpush.msra.mxu0 %v1675
  %v1677 = vand.u32 %v894, 4294901760
  %1678 = vmatpush.msra.mxu0 %v1677
  %v1679 = vand.u32 %v893, 4294901760
  %1680 = vmatpush.msra.mxu0 %v1679
  %v1681 = vand.u32 %v892, 4294901760
  %1682 = vmatpush.msra.mxu0 %v1681
  %v1683 = vand.u32 %v891, 4294901760
  %1684 = vmatpush.msra.mxu0 %v1683
  %v1685 = vand.u32 %v890, 4294901760
  %1686 = vmatpush.msra.mxu0 %v1685
  %v1687 = vand.u32 %v889, 4294901760
  %1688 = vmatpush.msra.mxu0 %v1687
  %v1689 = vand.u32 %v888, 4294901760
  %1690 = vmatpush.msra.mxu0 %v1689
  %v1691 = vand.u32 %v887, 4294901760
  %1692 = vmatpush.msra.mxu0 %v1691
  %v1693 = vand.u32 %v886, 4294901760
  %1694 = vmatpush.msra.mxu0 %v1693
  %v1695 = vand.u32 %v21, 4294901760
  %1696 = vmatmul.f32.gmra.mxu0 %v1695
  %v1697 = vpop.f32.mrf.mxu0
  %v1698 = vadd.f32 %v1653, %v1697
  %v1699 = vand.u32 %v23, 4294901760
  %1700 = vmatmul.f32.gmra.mxu0 %v1699
  %v1701 = vpop.f32.mrf.mxu0
  %v1702 = vadd.f32 %v1657, %v1701
  %v1703 = vand.u32 %v25, 4294901760
  %1704 = vmatmul.f32.gmra.mxu0 %v1703
  %v1705 = vpop.f32.mrf.mxu0
  %v1706 = vadd.f32 %v1661, %v1705
  %1707 = vdwg.mxu0
  %v1708 = vlaneseq
  %v1709 = vshrl.u32 %v1708, 7
  %v1710 = vadd.s32 %v1709, 8
  %v1711 = vadd.s32 %v1709, 16
  %s1712 = smul.u32 0, 20
  %v1713 = vstv %s1712
  %v1714 = vadd.s32 %v1713, %v1709
  %v1715 = vadd.s32 %v1713, %v1710
  %v1716 = vadd.s32 %v1713, %v1711
  %v1717 = vmul.u32 %v1714, 8
  %v1718 = vmul.u32 %v1715, 8
  %v1719 = vmul.u32 %v1716, 8
  %v1720 = vld [vmem:[%s1] sm:$0x3]
  %v1721 = vperm.slane %v1720, 0
  %vm1722 = vcmp.ge.s32.totalorder %v1717, %v1721
  %vm1723 = vcmp.ge.s32.totalorder %v1718, %v1721
  %vm1724 = vcmp.ge.s32.totalorder %v1719, %v1721
  %v1725 = vperm.slane %v1720, 1
  %vm1726 = vcmp.lt.s32.totalorder %v1717, %v1725
  %vm1727 = vcmp.lt.s32.totalorder %v1718, %v1725
  %vm1728 = vcmp.lt.s32.totalorder %v1719, %v1725
  %vm1729 = vmand %vm1722, %vm1726
  %vm1730 = vmand %vm1723, %vm1727
  %vm1731 = vmand %vm1724, %vm1728
  %v1732 = vsel %vm1729, %v1698, 0.0
  %v1733 = vsel %vm1730, %v1702, 0.0
  %v1734 = vsel %vm1731, %v1706, 0.0
  %v1735 = vld [vmem:[%s4] sm:$0xff]
  %v1736 = vld [vmem:[%s4 + $0x8] sm:$0xff]
  %v1737 = vld [vmem:[%s4 + $0x10] sm:$0xff]
  %vm1738 = vcmask 195584
  %v1740 = vsel %vm1738, %v1732, 0
  %v1743 = vsel %vm1738, %v1733, 0
  %v1746 = vsel %vm1738, %v1734, 0
  %1748 = vmatpush.msra.mxu0 0.0
  %1749 = vmatpush.msra.mxu0 0.0
  %1750 = vmatpush.msra.mxu0 0.0
  %1751 = vmatpush.msra.mxu0 0.0
  %1752 = vmatpush.msra.mxu0 0.0
  %1753 = vmatpush.msra.mxu0 0.0
  %1754 = vmatpush.msra.mxu0 0.0
  %1755 = vmatpush.msra.mxu0 0.0
  %1756 = vmatpush.msra.mxu0 0.0
  %1757 = vmatpush.msra.mxu0 0.0
  %1758 = vmatpush.msra.mxu0 0.0
  %1759 = vmatpush.msra.mxu0 0.0
  %1760 = vmatpush.msra.mxu0 0.0
  %v1761 = vand.u32 %v1737, 4294901760
  %1762 = vmatpush.msra.mxu0 %v1761
  %v1763 = vand.u32 %v1736, 4294901760
  %1764 = vmatpush.msra.mxu0 %v1763
  %v1765 = vand.u32 %v1735, 4294901760
  %1766 = vmatpush.msra.mxu0 %v1765
  %v1767 = vand.u32 %v1740, 4294901760
  %v1768 = vsub.f32 %v1740, %v1767
  %v1769 = vand.u32 %v1768, 4294901760
  %v1770 = vsub.f32 %v1768, %v1769
  %v1771 = vand.u32 %v1770, 4294901760
  %1772 = vmatmul.f32.gmra.mxu0 %v1771
  %v1773 = vpop.f32.mrf.mxu0
  %v1774 = vadd.f32 0.0, %v1773
  %v1775 = vand.u32 %v1743, 4294901760
  %v1776 = vsub.f32 %v1743, %v1775
  %v1777 = vand.u32 %v1776, 4294901760
  %v1778 = vsub.f32 %v1776, %v1777
  %v1779 = vand.u32 %v1778, 4294901760
  %1780 = vmatmul.f32.gmra.mxu0 %v1779
  %v1781 = vpop.f32.mrf.mxu0
  %v1782 = vadd.f32 0.0, %v1781
  %v1783 = vand.u32 %v1746, 4294901760
  %v1784 = vsub.f32 %v1746, %v1783
  %v1785 = vand.u32 %v1784, 4294901760
  %v1786 = vsub.f32 %v1784, %v1785
  %v1787 = vand.u32 %v1786, 4294901760
  %1788 = vmatmul.f32.gmra.mxu0 %v1787
  %v1789 = vpop.f32.mrf.mxu0
  %v1790 = vadd.f32 0.0, %v1789
  %1791 = vdwg.mxu0
  %1792 = vmatpush.msra.mxu0 0.0
  %1793 = vmatpush.msra.mxu0 0.0
  %1794 = vmatpush.msra.mxu0 0.0
  %1795 = vmatpush.msra.mxu0 0.0
  %1796 = vmatpush.msra.mxu0 0.0
  %1797 = vmatpush.msra.mxu0 0.0
  %1798 = vmatpush.msra.mxu0 0.0
  %1799 = vmatpush.msra.mxu0 0.0
  %1800 = vmatpush.msra.mxu0 0.0
  %1801 = vmatpush.msra.mxu0 0.0
  %1802 = vmatpush.msra.mxu0 0.0
  %1803 = vmatpush.msra.mxu0 0.0
  %1804 = vmatpush.msra.mxu0 0.0
  %v1805 = vand.u32 %v1737, 4294901760
  %v1806 = vsub.f32 %v1737, %v1805
  %v1807 = vand.u32 %v1806, 4294901760
  %v1808 = vsub.f32 %v1806, %v1807
  %v1809 = vand.u32 %v1808, 4294901760
  %1810 = vmatpush.msra.mxu0 %v1809
  %v1811 = vand.u32 %v1736, 4294901760
  %v1812 = vsub.f32 %v1736, %v1811
  %v1813 = vand.u32 %v1812, 4294901760
  %v1814 = vsub.f32 %v1812, %v1813
  %v1815 = vand.u32 %v1814, 4294901760
  %1816 = vmatpush.msra.mxu0 %v1815
  %v1817 = vand.u32 %v1735, 4294901760
  %v1818 = vsub.f32 %v1735, %v1817
  %v1819 = vand.u32 %v1818, 4294901760
  %v1820 = vsub.f32 %v1818, %v1819
  %v1821 = vand.u32 %v1820, 4294901760
  %1822 = vmatpush.msra.mxu0 %v1821
  %v1823 = vand.u32 %v1740, 4294901760
  %1824 = vmatmul.f32.gmra.mxu0 %v1823
  %v1825 = vpop.f32.mrf.mxu0
  %v1826 = vadd.f32 %v1774, %v1825
  %v1827 = vand.u32 %v1743, 4294901760
  %1828 = vmatmul.f32.gmra.mxu0 %v1827
  %v1829 = vpop.f32.mrf.mxu0
  %v1830 = vadd.f32 %v1782, %v1829
  %v1831 = vand.u32 %v1746, 4294901760
  %1832 = vmatmul.f32.gmra.mxu0 %v1831
  %v1833 = vpop.f32.mrf.mxu0
  %v1834 = vadd.f32 %v1790, %v1833
  %1835 = vdwg.mxu0
  %1836 = vmatpush.msra.mxu0 0.0
  %1837 = vmatpush.msra.mxu0 0.0
  %1838 = vmatpush.msra.mxu0 0.0
  %1839 = vmatpush.msra.mxu0 0.0
  %1840 = vmatpush.msra.mxu0 0.0
  %1841 = vmatpush.msra.mxu0 0.0
  %1842 = vmatpush.msra.mxu0 0.0
  %1843 = vmatpush.msra.mxu0 0.0
  %1844 = vmatpush.msra.mxu0 0.0
  %1845 = vmatpush.msra.mxu0 0.0
  %1846 = vmatpush.msra.mxu0 0.0
  %1847 = vmatpush.msra.mxu0 0.0
  %1848 = vmatpush.msra.mxu0 0.0
  %v1849 = vand.u32 %v1737, 4294901760
  %v1850 = vsub.f32 %v1737, %v1849
  %1851 = vmatpush.msra.mxu0 %v1850
  %v1852 = vand.u32 %v1736, 4294901760
  %v1853 = vsub.f32 %v1736, %v1852
  %1854 = vmatpush.msra.mxu0 %v1853
  %v1855 = vand.u32 %v1735, 4294901760
  %v1856 = vsub.f32 %v1735, %v1855
  %1857 = vmatpush.msra.mxu0 %v1856
  %v1858 = vand.u32 %v1740, 4294901760
  %v1859 = vsub.f32 %v1740, %v1858
  %1860 = vmatmul.f32.gmra.mxu0 %v1859
  %v1861 = vpop.f32.mrf.mxu0
  %v1862 = vadd.f32 %v1826, %v1861
  %v1863 = vand.u32 %v1743, 4294901760
  %v1864 = vsub.f32 %v1743, %v1863
  %1865 = vmatmul.f32.gmra.mxu0 %v1864
  %v1866 = vpop.f32.mrf.mxu0
  %v1867 = vadd.f32 %v1830, %v1866
  %v1868 = vand.u32 %v1746, 4294901760
  %v1869 = vsub.f32 %v1746, %v1868
  %1870 = vmatmul.f32.gmra.mxu0 %v1869
  %v1871 = vpop.f32.mrf.mxu0
  %v1872 = vadd.f32 %v1834, %v1871
  %1873 = vdwg.mxu0
  %1874 = vmatpush.msra.mxu0 0.0
  %1875 = vmatpush.msra.mxu0 0.0
  %1876 = vmatpush.msra.mxu0 0.0
  %1877 = vmatpush.msra.mxu0 0.0
  %1878 = vmatpush.msra.mxu0 0.0
  %1879 = vmatpush.msra.mxu0 0.0
  %1880 = vmatpush.msra.mxu0 0.0
  %1881 = vmatpush.msra.mxu0 0.0
  %1882 = vmatpush.msra.mxu0 0.0
  %1883 = vmatpush.msra.mxu0 0.0
  %1884 = vmatpush.msra.mxu0 0.0
  %1885 = vmatpush.msra.mxu0 0.0
  %1886 = vmatpush.msra.mxu0 0.0
  %v1887 = vand.u32 %v1737, 4294901760
  %1888 = vmatpush.msra.mxu0 %v1887
  %v1889 = vand.u32 %v1736, 4294901760
  %1890 = vmatpush.msra.mxu0 %v1889
  %v1891 = vand.u32 %v1735, 4294901760
  %1892 = vmatpush.msra.mxu0 %v1891
  %v1893 = vand.u32 %v1740, 4294901760
  %v1894 = vsub.f32 %v1740, %v1893
  %v1895 = vand.u32 %v1894, 4294901760
  %1896 = vmatmul.f32.gmra.mxu0 %v1895
  %v1897 = vpop.f32.mrf.mxu0
  %v1898 = vadd.f32 %v1862, %v1897
  %v1899 = vand.u32 %v1743, 4294901760
  %v1900 = vsub.f32 %v1743, %v1899
  %v1901 = vand.u32 %v1900, 4294901760
  %1902 = vmatmul.f32.gmra.mxu0 %v1901
  %v1903 = vpop.f32.mrf.mxu0
  %v1904 = vadd.f32 %v1867, %v1903
  %v1905 = vand.u32 %v1746, 4294901760
  %v1906 = vsub.f32 %v1746, %v1905
  %v1907 = vand.u32 %v1906, 4294901760
  %1908 = vmatmul.f32.gmra.mxu0 %v1907
  %v1909 = vpop.f32.mrf.mxu0
  %v1910 = vadd.f32 %v1872, %v1909
  %1911 = vdwg.mxu0
  %1912 = vmatpush.msra.mxu0 0.0
  %1913 = vmatpush.msra.mxu0 0.0
  %1914 = vmatpush.msra.mxu0 0.0
  %1915 = vmatpush.msra.mxu0 0.0
  %1916 = vmatpush.msra.mxu0 0.0
  %1917 = vmatpush.msra.mxu0 0.0
  %1918 = vmatpush.msra.mxu0 0.0
  %1919 = vmatpush.msra.mxu0 0.0
  %1920 = vmatpush.msra.mxu0 0.0
  %1921 = vmatpush.msra.mxu0 0.0
  %1922 = vmatpush.msra.mxu0 0.0
  %1923 = vmatpush.msra.mxu0 0.0
  %1924 = vmatpush.msra.mxu0 0.0
  %v1925 = vand.u32 %v1737, 4294901760
  %v1926 = vsub.f32 %v1737, %v1925
  %v1927 = vand.u32 %v1926, 4294901760
  %1928 = vmatpush.msra.mxu0 %v1927
  %v1929 = vand.u32 %v1736, 4294901760
  %v1930 = vsub.f32 %v1736, %v1929
  %v1931 = vand.u32 %v1930, 4294901760
  %1932 = vmatpush.msra.mxu0 %v1931
  %v1933 = vand.u32 %v1735, 4294901760
  %v1934 = vsub.f32 %v1735, %v1933
  %v1935 = vand.u32 %v1934, 4294901760
  %1936 = vmatpush.msra.mxu0 %v1935
  %v1937 = vand.u32 %v1740, 4294901760
  %1938 = vmatmul.f32.gmra.mxu0 %v1937
  %v1939 = vpop.f32.mrf.mxu0
  %v1940 = vadd.f32 %v1898, %v1939
  %v1941 = vand.u32 %v1743, 4294901760
  %1942 = vmatmul.f32.gmra.mxu0 %v1941
  %v1943 = vpop.f32.mrf.mxu0
  %v1944 = vadd.f32 %v1904, %v1943
  %v1945 = vand.u32 %v1746, 4294901760
  %1946 = vmatmul.f32.gmra.mxu0 %v1945
  %v1947 = vpop.f32.mrf.mxu0
  %v1948 = vadd.f32 %v1910, %v1947
  %1949 = vdwg.mxu0
  %1950 = vmatpush.msra.mxu0 0.0
  %1951 = vmatpush.msra.mxu0 0.0
  %1952 = vmatpush.msra.mxu0 0.0
  %1953 = vmatpush.msra.mxu0 0.0
  %1954 = vmatpush.msra.mxu0 0.0
  %1955 = vmatpush.msra.mxu0 0.0
  %1956 = vmatpush.msra.mxu0 0.0
  %1957 = vmatpush.msra.mxu0 0.0
  %1958 = vmatpush.msra.mxu0 0.0
  %1959 = vmatpush.msra.mxu0 0.0
  %1960 = vmatpush.msra.mxu0 0.0
  %1961 = vmatpush.msra.mxu0 0.0
  %1962 = vmatpush.msra.mxu0 0.0
  %v1963 = vand.u32 %v1737, 4294901760
  %1964 = vmatpush.msra.mxu0 %v1963
  %v1965 = vand.u32 %v1736, 4294901760
  %1966 = vmatpush.msra.mxu0 %v1965
  %v1967 = vand.u32 %v1735, 4294901760
  %1968 = vmatpush.msra.mxu0 %v1967
  %v1969 = vand.u32 %v1740, 4294901760
  %1970 = vmatmul.f32.gmra.mxu0 %v1969
  %v1971 = vpop.f32.mrf.mxu0
  %v1972 = vadd.f32 %v1940, %v1971
  %v1973 = vand.u32 %v1743, 4294901760
  %1974 = vmatmul.f32.gmra.mxu0 %v1973
  %v1975 = vpop.f32.mrf.mxu0
  %v1976 = vadd.f32 %v1944, %v1975
  %v1977 = vand.u32 %v1746, 4294901760
  %1978 = vmatmul.f32.gmra.mxu0 %v1977
  %v1979 = vpop.f32.mrf.mxu0
  %v1980 = vadd.f32 %v1948, %v1979
  %1981 = vdwg.mxu0
  %v1982 = vmax.f32 %v860, 1e-24
  %v1983 = vmax.f32 %v864, 1e-24
  %v1984 = vmax.f32 %v868, 1e-24
  %v1985 = vrsqrt.pop %v1982
  %v1986 = vmul.f32 %v1985, %v1982
  %v1987 = vmul.f32 %v1986, %v1985
  %v1988 = vmul.f32 0.5, %v1987
  %v1989 = vsub.f32 1.5, %v1988
  %v1990 = vmul.f32 %v1985, %v1989
  %vm1991 = vweird.f32 %v1982
  %vm1992 = vweird.f32 %v1985
  %vm1993 = vmor %vm1991, %vm1992
  %v1994 = vsel %vm1993, %v1985, %v1990
  %v1995 = vrsqrt.pop %v1983
  %v1996 = vmul.f32 %v1995, %v1983
  %v1997 = vmul.f32 %v1996, %v1995
  %v1998 = vmul.f32 0.5, %v1997
  %v1999 = vsub.f32 1.5, %v1998
  %v2000 = vmul.f32 %v1995, %v1999
  %vm2001 = vweird.f32 %v1983
  %vm2002 = vweird.f32 %v1995
  %vm2003 = vmor %vm2001, %vm2002
  %v2004 = vsel %vm2003, %v1995, %v2000
  %v2005 = vrsqrt.pop %v1984
  %v2006 = vmul.f32 %v2005, %v1984
  %v2007 = vmul.f32 %v2006, %v2005
  %v2008 = vmul.f32 0.5, %v2007
  %v2009 = vsub.f32 1.5, %v2008
  %v2010 = vmul.f32 %v2005, %v2009
  %vm2011 = vweird.f32 %v1984
  %vm2012 = vweird.f32 %v2005
  %vm2013 = vmor %vm2011, %vm2012
  %v2014 = vsel %vm2013, %v2005, %v2010
  %v2015 = vmul.f32 %v1972, %v1994
  %v2016 = vmul.f32 %v1976, %v2004
  %v2017 = vmul.f32 %v1980, %v2014
  %vm2018 = vcmask 64512
  %2019 = vst.msk [vmem:[%s5] sm:$0xff] %vm2018, %v2015
  %2020 = vst.msk [vmem:[%s5 + $0x8] sm:$0xff] %vm2018, %v2016
  %vm2021 = vcmask 60416
  %2022 = vst.msk [vmem:[%s5 + $0x10] sm:$0xf] %vm2021, %v2017
  // Predicated region
  $region22: #{tpu_custom_call.1} parent=0 // pred_check
    _
  $region23: #{tpu_custom_call.1} parent=0 // pred_check_branch
    %2024 = sbr.rel (0) target = $region25
  $region24: #{tpu_custom_call.1} parent=0 // pred_region
    _
  $region25: #{tpu_custom_call.1} parent=0 // pred_fallthru
    _
  // Predicated region
  $region26: #{tpu_custom_call.1} parent=0 // pred_check
    _
  $region27: #{tpu_custom_call.1} parent=0 // pred_check_branch
    %2026 = sbr.rel (0) target = $region29
  $region28: #{tpu_custom_call.1} parent=0 // pred_region
    _
  $region29: #{tpu_custom_call.1} parent=0 // pred_fallthru
    _

</llo_original>
